<compile_context>
chip_gen: v7x
topology: tpu7x:2x2x1
jax: 0.10.0
libtpu: 0.0.40
codegen_flags: <defaults>
</compile_context>

<pallas_src>
import functools
import math

import jax
import jax.numpy as jnp
import numpy as np
from jax.experimental import pallas as pl
from jax.experimental.pallas import tpu as pltpu


# ----------------------------------------------------------------------------
# Kernel
# ----------------------------------------------------------------------------
def _adapter_attn_kernel(x_ref, wqkv_ref, bqkv_ref, wp_ref, bp_ref,
                         wd_ref, bd_ref, wu_ref, bu_ref, o_ref,
                         qkv_s, attn_s, *, num_heads, head_dim):
    C = num_heads * head_dim
    N = x_ref.shape[0]
    del N  # (shapes are static; kept for readability)

    # --- qkv projection: one dense (N,C)@(C,3C) MXU matmul, f32 accumulation.
    #     (1/sqrt(D) scale already folded into the q columns/bias on the host.)
    qkv = jnp.dot(x_ref[...], wqkv_ref[...],
                  preferred_element_type=jnp.float32) + bqkv_ref[...]     # (N,3C) f32
    qkv_s[...] = qkv.astype(jnp.bfloat16)                                 # stage in VMEM

    # --- per-head attention; each head's output lands in its static column
    #     range of the (N, C) bf16 scratch (cheap masked sub-lane store).
    for h in range(num_heads):
        lo = h * head_dim
        qh = qkv_s[:, lo:lo + head_dim]                                   # (N, D) bf16
        kh = qkv_s[:, C + lo:C + lo + head_dim]                           # (N, D) bf16
        vh = qkv_s[:, 2 * C + lo:2 * C + lo + head_dim]                   # (N, D) bf16

        # q @ k^T without an explicit transpose (contract last dims of both).
        s = jax.lax.dot_general(qh, kh, (((1,), (1,)), ((), ())),
                                preferred_element_type=jnp.float32)       # (N, N) f32
        s = s - jnp.max(s, axis=-1, keepdims=True)
        p = jnp.exp(s)
        p = p * pl.reciprocal(jnp.sum(p, axis=-1, keepdims=True), approx=False)

        oh = jnp.dot(p.astype(jnp.bfloat16), vh,
                     preferred_element_type=jnp.float32)                  # (N, D) f32
        attn_s[:, lo:lo + head_dim] = oh.astype(jnp.bfloat16)

    # --- output projection: ONE full-depth (N,C)@(C,C) MXU matmul.
    proj = jnp.dot(attn_s[...], wp_ref[...],
                   preferred_element_type=jnp.float32) + bp_ref[...]      # (N, C) f32

    # --- adapter: up(GELU(down(proj))) + proj  (exact erf GELU, f32 elementwise)
    hdn = jnp.dot(proj.astype(jnp.bfloat16), wd_ref[...],
                  preferred_element_type=jnp.float32) + bd_ref[...]       # (N, A_pad)
    hdn = 0.5 * hdn * (1.0 + jax.lax.erf(hdn * (1.0 / math.sqrt(2.0))))
    up = jnp.dot(hdn.astype(jnp.bfloat16), wu_ref[...],
                 preferred_element_type=jnp.float32) + bu_ref[...]        # (N, C)

    o_ref[...] = (up + proj).astype(o_ref.dtype)


# ----------------------------------------------------------------------------
# Wrapper
# ----------------------------------------------------------------------------
def adapter_attn(x, params, *, num_heads):
    """x: (B, N, C) float32. params: dict of PyTorch-convention weights."""
    B, N, C = x.shape
    head_dim = C // num_heads
    scale = 1.0 / math.sqrt(head_dim)
    A = params["wd"].shape[0]
    A_pad = ((A + 127) // 128) * 128            # lane-dense adapter matmuls

    # ---- host-side weight prep (done once; nothing re-done per grid step) ----
    col_scale = jnp.where(jnp.arange(3 * C) < C, scale, 1.0).astype(jnp.float32)
    wqkv_t = (params["wqkv"].T * col_scale).astype(jnp.bfloat16)          # (C, 3C)
    bqkv = params["bqkv"].reshape(1, 3 * C).astype(jnp.float32) * col_scale
    wp_t = params["wp"].T.astype(jnp.bfloat16)                            # (C, C)
    bp = params["bp"].reshape(1, C).astype(jnp.float32)
    wd_t = jnp.zeros((C, A_pad), jnp.bfloat16).at[:, :A].set(
        params["wd"].T.astype(jnp.bfloat16))                              # (C, A_pad)
    bd = jnp.zeros((1, A_pad), jnp.float32).at[:, :A].set(
        params["bd"].reshape(1, A).astype(jnp.float32))                   # (1, A_pad)
    wu_t = jnp.zeros((A_pad, C), jnp.bfloat16).at[:A, :].set(
        params["wu"].T.astype(jnp.bfloat16))                              # (A_pad, C)
    bu = params["bu"].reshape(1, C).astype(jnp.float32)
    x_bf = x.astype(jnp.bfloat16)                                         # bf16 DMA

    kernel = functools.partial(_adapter_attn_kernel,
                               num_heads=num_heads, head_dim=head_dim)

    # ---- advisory cost estimate (helps XLA overlap neighbours with the call) ----
    flops = B * (2 * N * C * 3 * C        # qkv
                 + 4 * N * N * C          # scores + attn@v over all heads
                 + 2 * N * C * C          # output projection
                 + 4 * N * C * A_pad)     # adapter down + up
    transcendentals = B * (num_heads * N * N + N * A_pad)   # exp + erf
    bytes_accessed = (x_bf.size * 2 + B * N * C * 4
                      + (wqkv_t.size + wp_t.size + wd_t.size + wu_t.size) * 2
                      + (bqkv.size + bp.size + bd.size + bu.size) * 4)
    cost = pl.CostEstimate(flops=int(flops),
                           transcendentals=int(transcendentals),
                           bytes_accessed=int(bytes_accessed))

    # ---- derived VMEM budget, clamped so it is valid on v5e/v6e/v7x ----
    weight_bytes = (wqkv_t.size + wp_t.size + wd_t.size + wu_t.size) * 2
    bias_bytes = (bqkv.size + bp.size + bd.size + bu.size) * 4
    io_bytes = 2 * N * C * 2 + 2 * N * C * 4         # double-buffered x / out tiles
    scratch_bytes = N * 3 * C * 2 + N * C * 2        # staged qkv + head concat
    live_bytes = N * 3 * C * 4 + 2 * N * N * 4 + N * max(C, A_pad) * 4
    vmem_limit = int(min(40 * 2 ** 20,
                         max(16 * 2 ** 20,
                             2 * (2 * weight_bytes + 2 * bias_bytes + io_bytes
                                  + scratch_bytes + live_bytes))))

    args = (x_bf, wqkv_t, bqkv, wp_t, bp, wd_t, bd, wu_t, bu)

    def build(single_buffer_weights):
        def w_spec(shape):
            nd = len(shape)
            if single_buffer_weights:
                # Constant index_map -> weights DMA'd once; one VMEM copy only.
                return pl.BlockSpec(shape, lambda b: (0,) * nd,
                                    pipeline_mode=pl.Buffered(1))
            return pl.BlockSpec(shape, lambda b: (0,) * nd)

        return pl.pallas_call(
            kernel,
            out_shape=jax.ShapeDtypeStruct((B, N, C), x.dtype),
            grid_spec=pltpu.PrefetchScalarGridSpec(
                num_scalar_prefetch=0,
                grid=(B,),
                in_specs=[
                    pl.BlockSpec((None, N, C), lambda b: (b, 0, 0)),  # x -> (N, C)
                    w_spec((C, 3 * C)),                               # wqkv_t (scaled)
                    w_spec((1, 3 * C)),                               # bqkv   (scaled)
                    w_spec((C, C)),                                   # wp_t
                    w_spec((1, C)),                                   # bp
                    w_spec((C, A_pad)),                               # wd_t (padded)
                    w_spec((1, A_pad)),                               # bd   (padded)
                    w_spec((A_pad, C)),                               # wu_t (padded)
                    w_spec((1, C)),                                   # bu
                ],
                out_specs=pl.BlockSpec((None, N, C), lambda b: (b, 0, 0)),
                scratch_shapes=[
                    pltpu.VMEM((N, 3 * C), jnp.bfloat16),   # staged qkv
                    pltpu.VMEM((N, C), jnp.bfloat16),       # concatenated heads
                ],
            ),
            compiler_params=pltpu.CompilerParams(
                dimension_semantics=("parallel",),
                vmem_limit_bytes=vmem_limit,
            ),
            cost_estimate=cost,
        )

    try:
        return build(single_buffer_weights=True)(*args)
    except Exception:
        # Fallback for jax builds that reject pipeline_mode=pl.Buffered(1) on
        # the top-level pallas_call pipeline (default double-buffered weights).
        return build(single_buffer_weights=False)(*args)


# ----------------------------------------------------------------------------
# Pure-JAX reference (f32, for correctness check)
# ----------------------------------------------------------------------------
def adapter_attn_ref(x, p, *, num_heads):
    B, N, C = x.shape
    D = C // num_heads
    qkv = x @ p["wqkv"].T + p["bqkv"]                       # (B, N, 3C)
    qkv = qkv.reshape(B, N, 3, num_heads, D).transpose(2, 0, 3, 1, 4)
    q, k, v = qkv[0], qkv[1], qkv[2]                        # (B, H, N, D)
    s = jnp.einsum("bhnd,bhmd->bhnm", q, k) / math.sqrt(D)
    a = jax.nn.softmax(s, axis=-1)
    o = jnp.einsum("bhnm,bhmd->bhnd", a, v)
    o = o.transpose(0, 2, 1, 3).reshape(B, N, C)
    proj = o @ p["wp"].T + p["bp"]
    h = jax.nn.gelu(proj @ p["wd"].T + p["bd"], approximate=False)
    return h @ p["wu"].T + p["bu"] + proj


# ----------------------------------------------------------------------------
# Main
# ----------------------------------------------------------------------------
if __name__ == "__main__":
    B, N, C = 2, 8, 32          # batch, seq, embed dim (small correctness shapes)
    NUM_HEADS = 4
    ADAPTER_DIM = 16
    INIT_SCALE = 1e-3

    key = jax.random.PRNGKey(0)
    ks = jax.random.split(key, 6)

    # Attention weights: deterministic small-random init (synthetic weights).
    wqkv = jax.random.normal(ks[0], (3 * C, C), jnp.float32) * 0.05
    bqkv = jax.random.normal(ks[1], (1, 3 * C), jnp.float32) * 0.05
    wp = jax.random.normal(ks[2], (C, C), jnp.float32) * 0.05
    bp = jax.random.normal(ks[3], (1, C), jnp.float32) * 0.05

    # Adapter weights: uniform(-init_scale, init_scale), zero biases (as in __init__).
    wd = jax.random.uniform(ks[4], (ADAPTER_DIM, C), jnp.float32,
                            -INIT_SCALE, INIT_SCALE)
    bd = jnp.zeros((1, ADAPTER_DIM), jnp.float32)
    wu = jax.random.uniform(ks[5], (C, ADAPTER_DIM), jnp.float32,
                            -INIT_SCALE, INIT_SCALE)
    bu = jnp.zeros((1, C), jnp.float32)

    params = dict(wqkv=wqkv, bqkv=bqkv, wp=wp, bp=bp,
                  wd=wd, bd=bd, wu=wu, bu=bu)

    x = jax.random.normal(jax.random.PRNGKey(42), (B, N, C), jnp.float32)

    out = jax.block_until_ready(adapter_attn(x, params, num_heads=NUM_HEADS))

    ref = adapter_attn_ref(x, params, num_heads=NUM_HEADS)
    # bf16 MXU operands (f32 accumulation) -> loosened tolerance vs f32 reference.
    np.testing.assert_allclose(np.asarray(out), np.asarray(ref),
                               rtol=2e-2, atol=2e-2)
    print("KERNEL_OK")
</pallas_src>

<mosaic_0001>
module attributes {stable_mosaic.version = 11 : i64} {
  func.func @_adapter_attn_kernel(%arg0: i32, %arg1: memref<1x8x32xbf16, #tpu.memory_space<vmem>>, %arg2: memref<32x96xbf16, #tpu.memory_space<vmem>>, %arg3: memref<1x96xf32, #tpu.memory_space<vmem>>, %arg4: memref<32x32xbf16, #tpu.memory_space<vmem>>, %arg5: memref<1x32xf32, #tpu.memory_space<vmem>>, %arg6: memref<32x128xbf16, #tpu.memory_space<vmem>>, %arg7: memref<1x128xf32, #tpu.memory_space<vmem>>, %arg8: memref<128x32xbf16, #tpu.memory_space<vmem>>, %arg9: memref<1x32xf32, #tpu.memory_space<vmem>>, %arg10: memref<1x8x32xf32, #tpu.memory_space<vmem>>, %arg11: memref<8x96xbf16, #tpu.memory_space<vmem>>, %arg12: memref<8x32xbf16, #tpu.memory_space<vmem>>) attributes {dimension_semantics = [#tpu.dimension_semantics<parallel>], iteration_bounds = array<i64: 2>, scalar_prefetch = 0 : i64, scratch_operands = 2 : i64, tpu.core_type = #tpu.core_type<tc>, window_params = [{transform_indices = @transform_0, window_bounds = array<i64: 1, 8, 32>}, {pipeline_mode = #tpu.pipeline_mode<synchronous>, transform_indices = @transform_1, window_bounds = array<i64: 32, 96>}, {pipeline_mode = #tpu.pipeline_mode<synchronous>, transform_indices = @transform_2, window_bounds = array<i64: 1, 96>}, {pipeline_mode = #tpu.pipeline_mode<synchronous>, transform_indices = @transform_3, window_bounds = array<i64: 32, 32>}, {pipeline_mode = #tpu.pipeline_mode<synchronous>, transform_indices = @transform_4, window_bounds = array<i64: 1, 32>}, {pipeline_mode = #tpu.pipeline_mode<synchronous>, transform_indices = @transform_5, window_bounds = array<i64: 32, 128>}, {pipeline_mode = #tpu.pipeline_mode<synchronous>, transform_indices = @transform_6, window_bounds = array<i64: 1, 128>}, {pipeline_mode = #tpu.pipeline_mode<synchronous>, transform_indices = @transform_7, window_bounds = array<i64: 128, 32>}, {pipeline_mode = #tpu.pipeline_mode<synchronous>, transform_indices = @transform_8, window_bounds = array<i64: 1, 32>}, {transform_indices = @transform_9, window_bounds = array<i64: 1, 8, 32>}]} {
    %c0 = arith.constant 0 : index
    %c0_0 = arith.constant 0 : index
    %c0_1 = arith.constant 0 : index
    %0 = vector.load %arg1[%c0, %c0_0, %c0_1] : memref<1x8x32xbf16, #tpu.memory_space<vmem>>, vector<1x8x32xbf16>
    %1 = vector.shape_cast %0 : vector<1x8x32xbf16> to vector<8x32xbf16>
    %c0_2 = arith.constant 0 : index
    %c0_3 = arith.constant 0 : index
    %2 = vector.load %arg2[%c0_2, %c0_3] : memref<32x96xbf16, #tpu.memory_space<vmem>>, vector<32x96xbf16>
    %cst = arith.constant dense<0.000000e+00> : vector<8x96xf32>
    %3 = tpu.matmul %1, %2, %cst {dimension_numbers = #tpu.dot_dimension_numbers<[1], [0], [0], [1], [0, 0, 1, 1], [], []>} : vector<8x32xbf16>, vector<32x96xbf16>, vector<8x96xf32> -> vector<8x96xf32>
    %c0_4 = arith.constant 0 : index
    %c0_5 = arith.constant 0 : index
    %4 = vector.load %arg3[%c0_4, %c0_5] : memref<1x96xf32, #tpu.memory_space<vmem>>, vector<1x96xf32>
    %5 = vector.broadcast %4 : vector<1x96xf32> to vector<8x96xf32>
    %6 = arith.addf %3, %5 : vector<8x96xf32>
    %7 = arith.truncf %6 : vector<8x96xf32> to vector<8x96xbf16>
    %c0_6 = arith.constant 0 : index
    %c0_7 = arith.constant 0 : index
    %8 = vector.load %arg11[%c0_6, %c0_7] : memref<8x96xbf16, #tpu.memory_space<vmem>>, vector<8x96xbf16>
    tpu.vector_store %arg11[%c0_6, %c0_7], %7 {strides = array<i32>} : memref<8x96xbf16, #tpu.memory_space<vmem>>, vector<8x96xbf16>,
    %c0_8 = arith.constant 0 : index
    %c0_9 = arith.constant 0 : index
    %9 = vector.load %arg11[%c0_8, %c0_9] : memref<8x96xbf16, #tpu.memory_space<vmem>>, vector<8x8xbf16>
    %c0_10 = arith.constant 0 : index
    %c32 = arith.constant 32 : index
    %10 = vector.load %arg11[%c0_10, %c32] : memref<8x96xbf16, #tpu.memory_space<vmem>>, vector<8x8xbf16>
    %c0_11 = arith.constant 0 : index
    %c64 = arith.constant 64 : index
    %11 = vector.load %arg11[%c0_11, %c64] : memref<8x96xbf16, #tpu.memory_space<vmem>>, vector<8x8xbf16>
    %cst_12 = arith.constant dense<0.000000e+00> : vector<8x8xf32>
    %12 = tpu.matmul %9, %10, %cst_12 {dimension_numbers = #tpu.dot_dimension_numbers<[1], [1], [0], [0], [0, 0, 1, 0], [], []>} : vector<8x8xbf16>, vector<8x8xbf16>, vector<8x8xf32> -> vector<8x8xf32>
    %cst_13 = arith.constant dense<0xFF800000> : vector<8xf32>
    %13 = vector.multi_reduction <maximumf>, %12, %cst_13 [1] : vector<8x8xf32> to vector<8xf32>
    %14 = vector.shape_cast %13 : vector<8xf32> to vector<8x1xf32>
    %15 = vector.broadcast %14 : vector<8x1xf32> to vector<8x8xf32>
    %16 = arith.subf %12, %15 : vector<8x8xf32>
    %17 = math.exp %16 : vector<8x8xf32>
    %cst_14 = arith.constant dense<0.000000e+00> : vector<8xf32>
    %18 = vector.multi_reduction <add>, %17, %cst_14 [1] : vector<8x8xf32> to vector<8xf32>
    %19 = vector.shape_cast %18 : vector<8xf32> to vector<8x1xf32>
    %20 = tpu.reciprocal %19 : vector<8x1xf32> -> vector<8x1xf32>
    %21 = vector.broadcast %20 : vector<8x1xf32> to vector<8x8xf32>
    %22 = arith.mulf %17, %21 : vector<8x8xf32>
    %23 = arith.truncf %22 : vector<8x8xf32> to vector<8x8xbf16>
    %cst_15 = arith.constant dense<0.000000e+00> : vector<8x8xf32>
    %24 = tpu.matmul %23, %11, %cst_15 {dimension_numbers = #tpu.dot_dimension_numbers<[1], [0], [0], [1], [0, 0, 1, 1], [], []>} : vector<8x8xbf16>, vector<8x8xbf16>, vector<8x8xf32> -> vector<8x8xf32>
    %25 = arith.truncf %24 : vector<8x8xf32> to vector<8x8xbf16>
    %c0_16 = arith.constant 0 : index
    %c0_17 = arith.constant 0 : index
    %26 = vector.load %arg12[%c0_16, %c0_17] : memref<8x32xbf16, #tpu.memory_space<vmem>>, vector<8x8xbf16>
    tpu.vector_store %arg12[%c0_16, %c0_17], %25 {strides = array<i32>} : memref<8x32xbf16, #tpu.memory_space<vmem>>, vector<8x8xbf16>,
    %c0_18 = arith.constant 0 : index
    %c8 = arith.constant 8 : index
    %27 = vector.load %arg11[%c0_18, %c8] : memref<8x96xbf16, #tpu.memory_space<vmem>>, vector<8x8xbf16>
    %c0_19 = arith.constant 0 : index
    %c40 = arith.constant 40 : index
    %28 = vector.load %arg11[%c0_19, %c40] : memref<8x96xbf16, #tpu.memory_space<vmem>>, vector<8x8xbf16>
    %c0_20 = arith.constant 0 : index
    %c72 = arith.constant 72 : index
    %29 = vector.load %arg11[%c0_20, %c72] : memref<8x96xbf16, #tpu.memory_space<vmem>>, vector<8x8xbf16>
    %cst_21 = arith.constant dense<0.000000e+00> : vector<8x8xf32>
    %30 = tpu.matmul %27, %28, %cst_21 {dimension_numbers = #tpu.dot_dimension_numbers<[1], [1], [0], [0], [0, 0, 1, 0], [], []>} : vector<8x8xbf16>, vector<8x8xbf16>, vector<8x8xf32> -> vector<8x8xf32>
    %cst_22 = arith.constant dense<0xFF800000> : vector<8xf32>
    %31 = vector.multi_reduction <maximumf>, %30, %cst_22 [1] : vector<8x8xf32> to vector<8xf32>
    %32 = vector.shape_cast %31 : vector<8xf32> to vector<8x1xf32>
    %33 = vector.broadcast %32 : vector<8x1xf32> to vector<8x8xf32>
    %34 = arith.subf %30, %33 : vector<8x8xf32>
    %35 = math.exp %34 : vector<8x8xf32>
    %cst_23 = arith.constant dense<0.000000e+00> : vector<8xf32>
    %36 = vector.multi_reduction <add>, %35, %cst_23 [1] : vector<8x8xf32> to vector<8xf32>
    %37 = vector.shape_cast %36 : vector<8xf32> to vector<8x1xf32>
    %38 = tpu.reciprocal %37 : vector<8x1xf32> -> vector<8x1xf32>
    %39 = vector.broadcast %38 : vector<8x1xf32> to vector<8x8xf32>
    %40 = arith.mulf %35, %39 : vector<8x8xf32>
    %41 = arith.truncf %40 : vector<8x8xf32> to vector<8x8xbf16>
    %cst_24 = arith.constant dense<0.000000e+00> : vector<8x8xf32>
    %42 = tpu.matmul %41, %29, %cst_24 {dimension_numbers = #tpu.dot_dimension_numbers<[1], [0], [0], [1], [0, 0, 1, 1], [], []>} : vector<8x8xbf16>, vector<8x8xbf16>, vector<8x8xf32> -> vector<8x8xf32>
    %43 = arith.truncf %42 : vector<8x8xf32> to vector<8x8xbf16>
    %c0_25 = arith.constant 0 : index
    %c8_26 = arith.constant 8 : index
    %44 = vector.load %arg12[%c0_25, %c8_26] : memref<8x32xbf16, #tpu.memory_space<vmem>>, vector<8x8xbf16>
    tpu.vector_store %arg12[%c0_25, %c8_26], %43 {strides = array<i32>} : memref<8x32xbf16, #tpu.memory_space<vmem>>, vector<8x8xbf16>,
    %c0_27 = arith.constant 0 : index
    %c16 = arith.constant 16 : index
    %45 = vector.load %arg11[%c0_27, %c16] : memref<8x96xbf16, #tpu.memory_space<vmem>>, vector<8x8xbf16>
    %c0_28 = arith.constant 0 : index
    %c48 = arith.constant 48 : index
    %46 = vector.load %arg11[%c0_28, %c48] : memref<8x96xbf16, #tpu.memory_space<vmem>>, vector<8x8xbf16>
    %c0_29 = arith.constant 0 : index
    %c80 = arith.constant 80 : index
    %47 = vector.load %arg11[%c0_29, %c80] : memref<8x96xbf16, #tpu.memory_space<vmem>>, vector<8x8xbf16>
    %cst_30 = arith.constant dense<0.000000e+00> : vector<8x8xf32>
    %48 = tpu.matmul %45, %46, %cst_30 {dimension_numbers = #tpu.dot_dimension_numbers<[1], [1], [0], [0], [0, 0, 1, 0], [], []>} : vector<8x8xbf16>, vector<8x8xbf16>, vector<8x8xf32> -> vector<8x8xf32>
    %cst_31 = arith.constant dense<0xFF800000> : vector<8xf32>
    %49 = vector.multi_reduction <maximumf>, %48, %cst_31 [1] : vector<8x8xf32> to vector<8xf32>
    %50 = vector.shape_cast %49 : vector<8xf32> to vector<8x1xf32>
    %51 = vector.broadcast %50 : vector<8x1xf32> to vector<8x8xf32>
    %52 = arith.subf %48, %51 : vector<8x8xf32>
    %53 = math.exp %52 : vector<8x8xf32>
    %cst_32 = arith.constant dense<0.000000e+00> : vector<8xf32>
    %54 = vector.multi_reduction <add>, %53, %cst_32 [1] : vector<8x8xf32> to vector<8xf32>
    %55 = vector.shape_cast %54 : vector<8xf32> to vector<8x1xf32>
    %56 = tpu.reciprocal %55 : vector<8x1xf32> -> vector<8x1xf32>
    %57 = vector.broadcast %56 : vector<8x1xf32> to vector<8x8xf32>
    %58 = arith.mulf %53, %57 : vector<8x8xf32>
    %59 = arith.truncf %58 : vector<8x8xf32> to vector<8x8xbf16>
    %cst_33 = arith.constant dense<0.000000e+00> : vector<8x8xf32>
    %60 = tpu.matmul %59, %47, %cst_33 {dimension_numbers = #tpu.dot_dimension_numbers<[1], [0], [0], [1], [0, 0, 1, 1], [], []>} : vector<8x8xbf16>, vector<8x8xbf16>, vector<8x8xf32> -> vector<8x8xf32>
    %61 = arith.truncf %60 : vector<8x8xf32> to vector<8x8xbf16>
    %c0_34 = arith.constant 0 : index
    %c16_35 = arith.constant 16 : index
    %62 = vector.load %arg12[%c0_34, %c16_35] : memref<8x32xbf16, #tpu.memory_space<vmem>>, vector<8x8xbf16>
    tpu.vector_store %arg12[%c0_34, %c16_35], %61 {strides = array<i32>} : memref<8x32xbf16, #tpu.memory_space<vmem>>, vector<8x8xbf16>,
    %c0_36 = arith.constant 0 : index
    %c24 = arith.constant 24 : index
    %63 = vector.load %arg11[%c0_36, %c24] : memref<8x96xbf16, #tpu.memory_space<vmem>>, vector<8x8xbf16>
    %c0_37 = arith.constant 0 : index
    %c56 = arith.constant 56 : index
    %64 = vector.load %arg11[%c0_37, %c56] : memref<8x96xbf16, #tpu.memory_space<vmem>>, vector<8x8xbf16>
    %c0_38 = arith.constant 0 : index
    %c88 = arith.constant 88 : index
    %65 = vector.load %arg11[%c0_38, %c88] : memref<8x96xbf16, #tpu.memory_space<vmem>>, vector<8x8xbf16>
    %cst_39 = arith.constant dense<0.000000e+00> : vector<8x8xf32>
    %66 = tpu.matmul %63, %64, %cst_39 {dimension_numbers = #tpu.dot_dimension_numbers<[1], [1], [0], [0], [0, 0, 1, 0], [], []>} : vector<8x8xbf16>, vector<8x8xbf16>, vector<8x8xf32> -> vector<8x8xf32>
    %cst_40 = arith.constant dense<0xFF800000> : vector<8xf32>
    %67 = vector.multi_reduction <maximumf>, %66, %cst_40 [1] : vector<8x8xf32> to vector<8xf32>
    %68 = vector.shape_cast %67 : vector<8xf32> to vector<8x1xf32>
    %69 = vector.broadcast %68 : vector<8x1xf32> to vector<8x8xf32>
    %70 = arith.subf %66, %69 : vector<8x8xf32>
    %71 = math.exp %70 : vector<8x8xf32>
    %cst_41 = arith.constant dense<0.000000e+00> : vector<8xf32>
    %72 = vector.multi_reduction <add>, %71, %cst_41 [1] : vector<8x8xf32> to vector<8xf32>
    %73 = vector.shape_cast %72 : vector<8xf32> to vector<8x1xf32>
    %74 = tpu.reciprocal %73 : vector<8x1xf32> -> vector<8x1xf32>
    %75 = vector.broadcast %74 : vector<8x1xf32> to vector<8x8xf32>
    %76 = arith.mulf %71, %75 : vector<8x8xf32>
    %77 = arith.truncf %76 : vector<8x8xf32> to vector<8x8xbf16>
    %cst_42 = arith.constant dense<0.000000e+00> : vector<8x8xf32>
    %78 = tpu.matmul %77, %65, %cst_42 {dimension_numbers = #tpu.dot_dimension_numbers<[1], [0], [0], [1], [0, 0, 1, 1], [], []>} : vector<8x8xbf16>, vector<8x8xbf16>, vector<8x8xf32> -> vector<8x8xf32>
    %79 = arith.truncf %78 : vector<8x8xf32> to vector<8x8xbf16>
    %c0_43 = arith.constant 0 : index
    %c24_44 = arith.constant 24 : index
    %80 = vector.load %arg12[%c0_43, %c24_44] : memref<8x32xbf16, #tpu.memory_space<vmem>>, vector<8x8xbf16>
    tpu.vector_store %arg12[%c0_43, %c24_44], %79 {strides = array<i32>} : memref<8x32xbf16, #tpu.memory_space<vmem>>, vector<8x8xbf16>,
    %c0_45 = arith.constant 0 : index
    %c0_46 = arith.constant 0 : index
    %81 = vector.load %arg12[%c0_45, %c0_46] : memref<8x32xbf16, #tpu.memory_space<vmem>>, vector<8x32xbf16>
    %c0_47 = arith.constant 0 : index
    %c0_48 = arith.constant 0 : index
    %82 = vector.load %arg4[%c0_47, %c0_48] : memref<32x32xbf16, #tpu.memory_space<vmem>>, vector<32x32xbf16>
    %cst_49 = arith.constant dense<0.000000e+00> : vector<8x32xf32>
    %83 = tpu.matmul %81, %82, %cst_49 {dimension_numbers = #tpu.dot_dimension_numbers<[1], [0], [0], [1], [0, 0, 1, 1], [], []>} : vector<8x32xbf16>, vector<32x32xbf16>, vector<8x32xf32> -> vector<8x32xf32>
    %c0_50 = arith.constant 0 : index
    %c0_51 = arith.constant 0 : index
    %84 = vector.load %arg5[%c0_50, %c0_51] : memref<1x32xf32, #tpu.memory_space<vmem>>, vector<1x32xf32>
    %85 = vector.broadcast %84 : vector<1x32xf32> to vector<8x32xf32>
    %86 = arith.addf %83, %85 : vector<8x32xf32>
    %87 = arith.truncf %86 : vector<8x32xf32> to vector<8x32xbf16>
    %c0_52 = arith.constant 0 : index
    %c0_53 = arith.constant 0 : index
    %88 = vector.load %arg6[%c0_52, %c0_53] : memref<32x128xbf16, #tpu.memory_space<vmem>>, vector<32x128xbf16>
    %cst_54 = arith.constant dense<0.000000e+00> : vector<8x128xf32>
    %89 = tpu.matmul %87, %88, %cst_54 {dimension_numbers = #tpu.dot_dimension_numbers<[1], [0], [0], [1], [0, 0, 1, 1], [], []>} : vector<8x32xbf16>, vector<32x128xbf16>, vector<8x128xf32> -> vector<8x128xf32>
    %c0_55 = arith.constant 0 : index
    %c0_56 = arith.constant 0 : index
    %90 = vector.load %arg7[%c0_55, %c0_56] : memref<1x128xf32, #tpu.memory_space<vmem>>, vector<1x128xf32>
    %91 = vector.broadcast %90 : vector<1x128xf32> to vector<8x128xf32>
    %92 = arith.addf %89, %91 : vector<8x128xf32>
    %cst_57 = arith.constant 5.000000e-01 : f32
    %93 = vector.broadcast %cst_57 : f32 to vector<8x128xf32>
    %94 = arith.mulf %93, %92 : vector<8x128xf32>
    %cst_58 = arith.constant 0.707106769 : f32
    %95 = vector.broadcast %cst_58 : f32 to vector<8x128xf32>
    %96 = arith.mulf %92, %95 : vector<8x128xf32>
    %97 = math.erf %96 : vector<8x128xf32>
    %cst_59 = arith.constant 1.000000e+00 : f32
    %98 = vector.broadcast %cst_59 : f32 to vector<8x128xf32>
    %99 = arith.addf %98, %97 : vector<8x128xf32>
    %100 = arith.mulf %94, %99 : vector<8x128xf32>
    %101 = arith.truncf %100 : vector<8x128xf32> to vector<8x128xbf16>
    %c0_60 = arith.constant 0 : index
    %c0_61 = arith.constant 0 : index
    %102 = vector.load %arg8[%c0_60, %c0_61] : memref<128x32xbf16, #tpu.memory_space<vmem>>, vector<128x32xbf16>
    %cst_62 = arith.constant dense<0.000000e+00> : vector<8x32xf32>
    %103 = tpu.matmul %101, %102, %cst_62 {dimension_numbers = #tpu.dot_dimension_numbers<[1], [0], [0], [1], [0, 0, 1, 1], [], []>} : vector<8x128xbf16>, vector<128x32xbf16>, vector<8x32xf32> -> vector<8x32xf32>
    %c0_63 = arith.constant 0 : index
    %c0_64 = arith.constant 0 : index
    %104 = vector.load %arg9[%c0_63, %c0_64] : memref<1x32xf32, #tpu.memory_space<vmem>>, vector<1x32xf32>
    %105 = vector.broadcast %104 : vector<1x32xf32> to vector<8x32xf32>
    %106 = arith.addf %103, %105 : vector<8x32xf32>
    %107 = arith.addf %106, %86 : vector<8x32xf32>
    %c0_65 = arith.constant 0 : index
    %c0_66 = arith.constant 0 : index
    %c0_67 = arith.constant 0 : index
    %108 = vector.load %arg10[%c0_65, %c0_66, %c0_67] : memref<1x8x32xf32, #tpu.memory_space<vmem>>, vector<1x8x32xf32>
    %109 = vector.shape_cast %108 : vector<1x8x32xf32> to vector<8x32xf32>
    %110 = vector.shape_cast %107 : vector<8x32xf32> to vector<1x8x32xf32>
    tpu.vector_store %arg10[%c0_65, %c0_66, %c0_67], %110 {strides = array<i32>} : memref<1x8x32xf32, #tpu.memory_space<vmem>>, vector<1x8x32xf32>,
    return
  }
  func.func @transform_0(%arg0: i32) -> (i32, i32, i32) {
    %c0_i32 = arith.constant 0 : i32
    %c0_i32_0 = arith.constant 0 : i32
    %c0_i32_1 = arith.constant 0 : i32
    return %arg0, %c0_i32, %c0_i32_0 : i32, i32, i32
  }
  func.func @transform_1(%arg0: i32) -> (i32, i32) {
    %c0_i32 = arith.constant 0 : i32
    %c0_i32_0 = arith.constant 0 : i32
    %c0_i32_1 = arith.constant 0 : i32
    return %c0_i32, %c0_i32_0 : i32, i32
  }
  func.func @transform_2(%arg0: i32) -> (i32, i32) {
    %c0_i32 = arith.constant 0 : i32
    %c0_i32_0 = arith.constant 0 : i32
    %c0_i32_1 = arith.constant 0 : i32
    return %c0_i32, %c0_i32_0 : i32, i32
  }
  func.func @transform_3(%arg0: i32) -> (i32, i32) {
    %c0_i32 = arith.constant 0 : i32
    %c0_i32_0 = arith.constant 0 : i32
    %c0_i32_1 = arith.constant 0 : i32
    return %c0_i32, %c0_i32_0 : i32, i32
  }
  func.func @transform_4(%arg0: i32) -> (i32, i32) {
    %c0_i32 = arith.constant 0 : i32
    %c0_i32_0 = arith.constant 0 : i32
    %c0_i32_1 = arith.constant 0 : i32
    return %c0_i32, %c0_i32_0 : i32, i32
  }
  func.func @transform_5(%arg0: i32) -> (i32, i32) {
    %c0_i32 = arith.constant 0 : i32
    %c0_i32_0 = arith.constant 0 : i32
    %c0_i32_1 = arith.constant 0 : i32
    return %c0_i32, %c0_i32_0 : i32, i32
  }
  func.func @transform_6(%arg0: i32) -> (i32, i32) {
    %c0_i32 = arith.constant 0 : i32
    %c0_i32_0 = arith.constant 0 : i32
    %c0_i32_1 = arith.constant 0 : i32
    return %c0_i32, %c0_i32_0 : i32, i32
  }
  func.func @transform_7(%arg0: i32) -> (i32, i32) {
    %c0_i32 = arith.constant 0 : i32
    %c0_i32_0 = arith.constant 0 : i32
    %c0_i32_1 = arith.constant 0 : i32
    return %c0_i32, %c0_i32_0 : i32, i32
  }
  func.func @transform_8(%arg0: i32) -> (i32, i32) {
    %c0_i32 = arith.constant 0 : i32
    %c0_i32_0 = arith.constant 0 : i32
    %c0_i32_1 = arith.constant 0 : i32
    return %c0_i32, %c0_i32_0 : i32, i32
  }
  func.func @transform_9(%arg0: i32) -> (i32, i32, i32) {
    %c0_i32 = arith.constant 0 : i32
    %c0_i32_0 = arith.constant 0 : i32
    %c0_i32_1 = arith.constant 0 : i32
    return %arg0, %c0_i32, %c0_i32_0 : i32, i32, i32
  }
}

module attributes {stable_mosaic.version = 11 : i64} {
  func.func @_adapter_attn_kernel(%arg0: i32, %arg1: memref<1x8x32xbf16, #tpu.memory_space<vmem>>, %arg2: memref<32x96xbf16, #tpu.memory_space<vmem>>, %arg3: memref<1x96xf32, #tpu.memory_space<vmem>>, %arg4: memref<32x32xbf16, #tpu.memory_space<vmem>>, %arg5: memref<1x32xf32, #tpu.memory_space<vmem>>, %arg6: memref<32x128xbf16, #tpu.memory_space<vmem>>, %arg7: memref<1x128xf32, #tpu.memory_space<vmem>>, %arg8: memref<128x32xbf16, #tpu.memory_space<vmem>>, %arg9: memref<1x32xf32, #tpu.memory_space<vmem>>, %arg10: memref<1x8x32xf32, #tpu.memory_space<vmem>>, %arg11: memref<8x96xbf16, #tpu.memory_space<vmem>>, %arg12: memref<8x32xbf16, #tpu.memory_space<vmem>>) attributes {dimension_semantics = [#tpu.dimension_semantics<parallel>], iteration_bounds = array<i64: 2>, scalar_prefetch = 0 : i64, scratch_operands = 2 : i64, tpu.core_type = #tpu.core_type<tc>, window_params = [{transform_indices = @transform_0, window_bounds = array<i64: 1, 8, 32>}, {pipeline_mode = #tpu.pipeline_mode<synchronous>, transform_indices = @transform_1, window_bounds = array<i64: 32, 96>}, {pipeline_mode = #tpu.pipeline_mode<synchronous>, transform_indices = @transform_2, window_bounds = array<i64: 1, 96>}, {pipeline_mode = #tpu.pipeline_mode<synchronous>, transform_indices = @transform_3, window_bounds = array<i64: 32, 32>}, {pipeline_mode = #tpu.pipeline_mode<synchronous>, transform_indices = @transform_4, window_bounds = array<i64: 1, 32>}, {pipeline_mode = #tpu.pipeline_mode<synchronous>, transform_indices = @transform_5, window_bounds = array<i64: 32, 128>}, {pipeline_mode = #tpu.pipeline_mode<synchronous>, transform_indices = @transform_6, window_bounds = array<i64: 1, 128>}, {pipeline_mode = #tpu.pipeline_mode<synchronous>, transform_indices = @transform_7, window_bounds = array<i64: 128, 32>}, {pipeline_mode = #tpu.pipeline_mode<synchronous>, transform_indices = @transform_8, window_bounds = array<i64: 1, 32>}, {transform_indices = @transform_9, window_bounds = array<i64: 1, 8, 32>}]} {
    %c0 = arith.constant 0 : index
    %c0_0 = arith.constant 0 : index
    %c0_1 = arith.constant 0 : index
    %0 = vector.load %arg1[%c0, %c0_0, %c0_1] : memref<1x8x32xbf16, #tpu.memory_space<vmem>>, vector<1x8x32xbf16>
    %1 = vector.shape_cast %0 : vector<1x8x32xbf16> to vector<8x32xbf16>
    %c0_2 = arith.constant 0 : index
    %c0_3 = arith.constant 0 : index
    %2 = vector.load %arg2[%c0_2, %c0_3] : memref<32x96xbf16, #tpu.memory_space<vmem>>, vector<32x96xbf16>
    %cst = arith.constant dense<0.000000e+00> : vector<8x96xf32>
    %3 = tpu.matmul %1, %2, %cst {dimension_numbers = #tpu.dot_dimension_numbers<[1], [0], [0], [1], [0, 0, 1, 1], [], []>} : vector<8x32xbf16>, vector<32x96xbf16>, vector<8x96xf32> -> vector<8x96xf32>
    %c0_4 = arith.constant 0 : index
    %c0_5 = arith.constant 0 : index
    %4 = vector.load %arg3[%c0_4, %c0_5] : memref<1x96xf32, #tpu.memory_space<vmem>>, vector<1x96xf32>
    %5 = vector.broadcast %4 : vector<1x96xf32> to vector<8x96xf32>
    %6 = arith.addf %3, %5 : vector<8x96xf32>
    %7 = arith.truncf %6 : vector<8x96xf32> to vector<8x96xbf16>
    %c0_6 = arith.constant 0 : index
    %c0_7 = arith.constant 0 : index
    %8 = vector.load %arg11[%c0_6, %c0_7] : memref<8x96xbf16, #tpu.memory_space<vmem>>, vector<8x96xbf16>
    tpu.vector_store %arg11[%c0_6, %c0_7], %7 {strides = array<i32>} : memref<8x96xbf16, #tpu.memory_space<vmem>>, vector<8x96xbf16>,
    %c0_8 = arith.constant 0 : index
    %c0_9 = arith.constant 0 : index
    %9 = vector.load %arg11[%c0_8, %c0_9] : memref<8x96xbf16, #tpu.memory_space<vmem>>, vector<8x8xbf16>
    %c0_10 = arith.constant 0 : index
    %c32 = arith.constant 32 : index
    %10 = vector.load %arg11[%c0_10, %c32] : memref<8x96xbf16, #tpu.memory_space<vmem>>, vector<8x8xbf16>
    %c0_11 = arith.constant 0 : index
    %c64 = arith.constant 64 : index
    %11 = vector.load %arg11[%c0_11, %c64] : memref<8x96xbf16, #tpu.memory_space<vmem>>, vector<8x8xbf16>
    %cst_12 = arith.constant dense<0.000000e+00> : vector<8x8xf32>
    %12 = tpu.matmul %9, %10, %cst_12 {dimension_numbers = #tpu.dot_dimension_numbers<[1], [1], [0], [0], [0, 0, 1, 0], [], []>} : vector<8x8xbf16>, vector<8x8xbf16>, vector<8x8xf32> -> vector<8x8xf32>
    %cst_13 = arith.constant dense<0xFF800000> : vector<8xf32>
    %13 = vector.multi_reduction <maximumf>, %12, %cst_13 [1] : vector<8x8xf32> to vector<8xf32>
    %14 = vector.shape_cast %13 : vector<8xf32> to vector<8x1xf32>
    %15 = vector.broadcast %14 : vector<8x1xf32> to vector<8x8xf32>
    %16 = arith.subf %12, %15 : vector<8x8xf32>
    %17 = math.exp %16 : vector<8x8xf32>
    %cst_14 = arith.constant dense<0.000000e+00> : vector<8xf32>
    %18 = vector.multi_reduction <add>, %17, %cst_14 [1] : vector<8x8xf32> to vector<8xf32>
    %19 = vector.shape_cast %18 : vector<8xf32> to vector<8x1xf32>
    %20 = tpu.reciprocal %19 : vector<8x1xf32> -> vector<8x1xf32>
    %21 = vector.broadcast %20 : vector<8x1xf32> to vector<8x8xf32>
    %22 = arith.mulf %17, %21 : vector<8x8xf32>
    %23 = arith.truncf %22 : vector<8x8xf32> to vector<8x8xbf16>
    %cst_15 = arith.constant dense<0.000000e+00> : vector<8x8xf32>
    %24 = tpu.matmul %23, %11, %cst_15 {dimension_numbers = #tpu.dot_dimension_numbers<[1], [0], [0], [1], [0, 0, 1, 1], [], []>} : vector<8x8xbf16>, vector<8x8xbf16>, vector<8x8xf32> -> vector<8x8xf32>
    %25 = arith.truncf %24 : vector<8x8xf32> to vector<8x8xbf16>
    %c0_16 = arith.constant 0 : index
    %c0_17 = arith.constant 0 : index
    %26 = vector.load %arg12[%c0_16, %c0_17] : memref<8x32xbf16, #tpu.memory_space<vmem>>, vector<8x8xbf16>
    tpu.vector_store %arg12[%c0_16, %c0_17], %25 {strides = array<i32>} : memref<8x32xbf16, #tpu.memory_space<vmem>>, vector<8x8xbf16>,
    %c0_18 = arith.constant 0 : index
    %c8 = arith.constant 8 : index
    %27 = vector.load %arg11[%c0_18, %c8] : memref<8x96xbf16, #tpu.memory_space<vmem>>, vector<8x8xbf16>
    %c0_19 = arith.constant 0 : index
    %c40 = arith.constant 40 : index
    %28 = vector.load %arg11[%c0_19, %c40] : memref<8x96xbf16, #tpu.memory_space<vmem>>, vector<8x8xbf16>
    %c0_20 = arith.constant 0 : index
    %c72 = arith.constant 72 : index
    %29 = vector.load %arg11[%c0_20, %c72] : memref<8x96xbf16, #tpu.memory_space<vmem>>, vector<8x8xbf16>
    %cst_21 = arith.constant dense<0.000000e+00> : vector<8x8xf32>
    %30 = tpu.matmul %27, %28, %cst_21 {dimension_numbers = #tpu.dot_dimension_numbers<[1], [1], [0], [0], [0, 0, 1, 0], [], []>} : vector<8x8xbf16>, vector<8x8xbf16>, vector<8x8xf32> -> vector<8x8xf32>
    %cst_22 = arith.constant dense<0xFF800000> : vector<8xf32>
    %31 = vector.multi_reduction <maximumf>, %30, %cst_22 [1] : vector<8x8xf32> to vector<8xf32>
    %32 = vector.shape_cast %31 : vector<8xf32> to vector<8x1xf32>
    %33 = vector.broadcast %32 : vector<8x1xf32> to vector<8x8xf32>
    %34 = arith.subf %30, %33 : vector<8x8xf32>
    %35 = math.exp %34 : vector<8x8xf32>
    %cst_23 = arith.constant dense<0.000000e+00> : vector<8xf32>
    %36 = vector.multi_reduction <add>, %35, %cst_23 [1] : vector<8x8xf32> to vector<8xf32>
    %37 = vector.shape_cast %36 : vector<8xf32> to vector<8x1xf32>
    %38 = tpu.reciprocal %37 : vector<8x1xf32> -> vector<8x1xf32>
    %39 = vector.broadcast %38 : vector<8x1xf32> to vector<8x8xf32>
    %40 = arith.mulf %35, %39 : vector<8x8xf32>
    %41 = arith.truncf %40 : vector<8x8xf32> to vector<8x8xbf16>
    %cst_24 = arith.constant dense<0.000000e+00> : vector<8x8xf32>
    %42 = tpu.matmul %41, %29, %cst_24 {dimension_numbers = #tpu.dot_dimension_numbers<[1], [0], [0], [1], [0, 0, 1, 1], [], []>} : vector<8x8xbf16>, vector<8x8xbf16>, vector<8x8xf32> -> vector<8x8xf32>
    %43 = arith.truncf %42 : vector<8x8xf32> to vector<8x8xbf16>
    %c0_25 = arith.constant 0 : index
    %c8_26 = arith.constant 8 : index
    %44 = vector.load %arg12[%c0_25, %c8_26] : memref<8x32xbf16, #tpu.memory_space<vmem>>, vector<8x8xbf16>
    tpu.vector_store %arg12[%c0_25, %c8_26], %43 {strides = array<i32>} : memref<8x32xbf16, #tpu.memory_space<vmem>>, vector<8x8xbf16>,
    %c0_27 = arith.constant 0 : index
    %c16 = arith.constant 16 : index
    %45 = vector.load %arg11[%c0_27, %c16] : memref<8x96xbf16, #tpu.memory_space<vmem>>, vector<8x8xbf16>
    %c0_28 = arith.constant 0 : index
    %c48 = arith.constant 48 : index
    %46 = vector.load %arg11[%c0_28, %c48] : memref<8x96xbf16, #tpu.memory_space<vmem>>, vector<8x8xbf16>
    %c0_29 = arith.constant 0 : index
    %c80 = arith.constant 80 : index
    %47 = vector.load %arg11[%c0_29, %c80] : memref<8x96xbf16, #tpu.memory_space<vmem>>, vector<8x8xbf16>
    %cst_30 = arith.constant dense<0.000000e+00> : vector<8x8xf32>
    %48 = tpu.matmul %45, %46, %cst_30 {dimension_numbers = #tpu.dot_dimension_numbers<[1], [1], [0], [0], [0, 0, 1, 0], [], []>} : vector<8x8xbf16>, vector<8x8xbf16>, vector<8x8xf32> -> vector<8x8xf32>
    %cst_31 = arith.constant dense<0xFF800000> : vector<8xf32>
    %49 = vector.multi_reduction <maximumf>, %48, %cst_31 [1] : vector<8x8xf32> to vector<8xf32>
    %50 = vector.shape_cast %49 : vector<8xf32> to vector<8x1xf32>
    %51 = vector.broadcast %50 : vector<8x1xf32> to vector<8x8xf32>
    %52 = arith.subf %48, %51 : vector<8x8xf32>
    %53 = math.exp %52 : vector<8x8xf32>
    %cst_32 = arith.constant dense<0.000000e+00> : vector<8xf32>
    %54 = vector.multi_reduction <add>, %53, %cst_32 [1] : vector<8x8xf32> to vector<8xf32>
    %55 = vector.shape_cast %54 : vector<8xf32> to vector<8x1xf32>
    %56 = tpu.reciprocal %55 : vector<8x1xf32> -> vector<8x1xf32>
    %57 = vector.broadcast %56 : vector<8x1xf32> to vector<8x8xf32>
    %58 = arith.mulf %53, %57 : vector<8x8xf32>
    %59 = arith.truncf %58 : vector<8x8xf32> to vector<8x8xbf16>
    %cst_33 = arith.constant dense<0.000000e+00> : vector<8x8xf32>
    %60 = tpu.matmul %59, %47, %cst_33 {dimension_numbers = #tpu.dot_dimension_numbers<[1], [0], [0], [1], [0, 0, 1, 1], [], []>} : vector<8x8xbf16>, vector<8x8xbf16>, vector<8x8xf32> -> vector<8x8xf32>
    %61 = arith.truncf %60 : vector<8x8xf32> to vector<8x8xbf16>
    %c0_34 = arith.constant 0 : index
    %c16_35 = arith.constant 16 : index
    %62 = vector.load %arg12[%c0_34, %c16_35] : memref<8x32xbf16, #tpu.memory_space<vmem>>, vector<8x8xbf16>
    tpu.vector_store %arg12[%c0_34, %c16_35], %61 {strides = array<i32>} : memref<8x32xbf16, #tpu.memory_space<vmem>>, vector<8x8xbf16>,
    %c0_36 = arith.constant 0 : index
    %c24 = arith.constant 24 : index
    %63 = vector.load %arg11[%c0_36, %c24] : memref<8x96xbf16, #tpu.memory_space<vmem>>, vector<8x8xbf16>
    %c0_37 = arith.constant 0 : index
    %c56 = arith.constant 56 : index
    %64 = vector.load %arg11[%c0_37, %c56] : memref<8x96xbf16, #tpu.memory_space<vmem>>, vector<8x8xbf16>
    %c0_38 = arith.constant 0 : index
    %c88 = arith.constant 88 : index
    %65 = vector.load %arg11[%c0_38, %c88] : memref<8x96xbf16, #tpu.memory_space<vmem>>, vector<8x8xbf16>
    %cst_39 = arith.constant dense<0.000000e+00> : vector<8x8xf32>
    %66 = tpu.matmul %63, %64, %cst_39 {dimension_numbers = #tpu.dot_dimension_numbers<[1], [1], [0], [0], [0, 0, 1, 0], [], []>} : vector<8x8xbf16>, vector<8x8xbf16>, vector<8x8xf32> -> vector<8x8xf32>
    %cst_40 = arith.constant dense<0xFF800000> : vector<8xf32>
    %67 = vector.multi_reduction <maximumf>, %66, %cst_40 [1] : vector<8x8xf32> to vector<8xf32>
    %68 = vector.shape_cast %67 : vector<8xf32> to vector<8x1xf32>
    %69 = vector.broadcast %68 : vector<8x1xf32> to vector<8x8xf32>
    %70 = arith.subf %66, %69 : vector<8x8xf32>
    %71 = math.exp %70 : vector<8x8xf32>
    %cst_41 = arith.constant dense<0.000000e+00> : vector<8xf32>
    %72 = vector.multi_reduction <add>, %71, %cst_41 [1] : vector<8x8xf32> to vector<8xf32>
    %73 = vector.shape_cast %72 : vector<8xf32> to vector<8x1xf32>
    %74 = tpu.reciprocal %73 : vector<8x1xf32> -> vector<8x1xf32>
    %75 = vector.broadcast %74 : vector<8x1xf32> to vector<8x8xf32>
    %76 = arith.mulf %71, %75 : vector<8x8xf32>
    %77 = arith.truncf %76 : vector<8x8xf32> to vector<8x8xbf16>
    %cst_42 = arith.constant dense<0.000000e+00> : vector<8x8xf32>
    %78 = tpu.matmul %77, %65, %cst_42 {dimension_numbers = #tpu.dot_dimension_numbers<[1], [0], [0], [1], [0, 0, 1, 1], [], []>} : vector<8x8xbf16>, vector<8x8xbf16>, vector<8x8xf32> -> vector<8x8xf32>
    %79 = arith.truncf %78 : vector<8x8xf32> to vector<8x8xbf16>
    %c0_43 = arith.constant 0 : index
    %c24_44 = arith.constant 24 : index
    %80 = vector.load %arg12[%c0_43, %c24_44] : memref<8x32xbf16, #tpu.memory_space<vmem>>, vector<8x8xbf16>
    tpu.vector_store %arg12[%c0_43, %c24_44], %79 {strides = array<i32>} : memref<8x32xbf16, #tpu.memory_space<vmem>>, vector<8x8xbf16>,
    %c0_45 = arith.constant 0 : index
    %c0_46 = arith.constant 0 : index
    %81 = vector.load %arg12[%c0_45, %c0_46] : memref<8x32xbf16, #tpu.memory_space<vmem>>, vector<8x32xbf16>
    %c0_47 = arith.constant 0 : index
    %c0_48 = arith.constant 0 : index
    %82 = vector.load %arg4[%c0_47, %c0_48] : memref<32x32xbf16, #tpu.memory_space<vmem>>, vector<32x32xbf16>
    %cst_49 = arith.constant dense<0.000000e+00> : vector<8x32xf32>
    %83 = tpu.matmul %81, %82, %cst_49 {dimension_numbers = #tpu.dot_dimension_numbers<[1], [0], [0], [1], [0, 0, 1, 1], [], []>} : vector<8x32xbf16>, vector<32x32xbf16>, vector<8x32xf32> -> vector<8x32xf32>
    %c0_50 = arith.constant 0 : index
    %c0_51 = arith.constant 0 : index
    %84 = vector.load %arg5[%c0_50, %c0_51] : memref<1x32xf32, #tpu.memory_space<vmem>>, vector<1x32xf32>
    %85 = vector.broadcast %84 : vector<1x32xf32> to vector<8x32xf32>
    %86 = arith.addf %83, %85 : vector<8x32xf32>
    %87 = arith.truncf %86 : vector<8x32xf32> to vector<8x32xbf16>
    %c0_52 = arith.constant 0 : index
    %c0_53 = arith.constant 0 : index
    %88 = vector.load %arg6[%c0_52, %c0_53] : memref<32x128xbf16, #tpu.memory_space<vmem>>, vector<32x128xbf16>
    %cst_54 = arith.constant dense<0.000000e+00> : vector<8x128xf32>
    %89 = tpu.matmul %87, %88, %cst_54 {dimension_numbers = #tpu.dot_dimension_numbers<[1], [0], [0], [1], [0, 0, 1, 1], [], []>} : vector<8x32xbf16>, vector<32x128xbf16>, vector<8x128xf32> -> vector<8x128xf32>
    %c0_55 = arith.constant 0 : index
    %c0_56 = arith.constant 0 : index
    %90 = vector.load %arg7[%c0_55, %c0_56] : memref<1x128xf32, #tpu.memory_space<vmem>>, vector<1x128xf32>
    %91 = vector.broadcast %90 : vector<1x128xf32> to vector<8x128xf32>
    %92 = arith.addf %89, %91 : vector<8x128xf32>
    %cst_57 = arith.constant 5.000000e-01 : f32
    %93 = vector.broadcast %cst_57 : f32 to vector<8x128xf32>
    %94 = arith.mulf %93, %92 : vector<8x128xf32>
    %cst_58 = arith.constant 0.707106769 : f32
    %95 = vector.broadcast %cst_58 : f32 to vector<8x128xf32>
    %96 = arith.mulf %92, %95 : vector<8x128xf32>
    %97 = math.erf %96 : vector<8x128xf32>
    %cst_59 = arith.constant 1.000000e+00 : f32
    %98 = vector.broadcast %cst_59 : f32 to vector<8x128xf32>
    %99 = arith.addf %98, %97 : vector<8x128xf32>
    %100 = arith.mulf %94, %99 : vector<8x128xf32>
    %101 = arith.truncf %100 : vector<8x128xf32> to vector<8x128xbf16>
    %c0_60 = arith.constant 0 : index
    %c0_61 = arith.constant 0 : index
    %102 = vector.load %arg8[%c0_60, %c0_61] : memref<128x32xbf16, #tpu.memory_space<vmem>>, vector<128x32xbf16>
    %cst_62 = arith.constant dense<0.000000e+00> : vector<8x32xf32>
    %103 = tpu.matmul %101, %102, %cst_62 {dimension_numbers = #tpu.dot_dimension_numbers<[1], [0], [0], [1], [0, 0, 1, 1], [], []>} : vector<8x128xbf16>, vector<128x32xbf16>, vector<8x32xf32> -> vector<8x32xf32>
    %c0_63 = arith.constant 0 : index
    %c0_64 = arith.constant 0 : index
    %104 = vector.load %arg9[%c0_63, %c0_64] : memref<1x32xf32, #tpu.memory_space<vmem>>, vector<1x32xf32>
    %105 = vector.broadcast %104 : vector<1x32xf32> to vector<8x32xf32>
    %106 = arith.addf %103, %105 : vector<8x32xf32>
    %107 = arith.addf %106, %86 : vector<8x32xf32>
    %c0_65 = arith.constant 0 : index
    %c0_66 = arith.constant 0 : index
    %c0_67 = arith.constant 0 : index
    %108 = vector.load %arg10[%c0_65, %c0_66, %c0_67] : memref<1x8x32xf32, #tpu.memory_space<vmem>>, vector<1x8x32xf32>
    %109 = vector.shape_cast %108 : vector<1x8x32xf32> to vector<8x32xf32>
    %110 = vector.shape_cast %107 : vector<8x32xf32> to vector<1x8x32xf32>
    tpu.vector_store %arg10[%c0_65, %c0_66, %c0_67], %110 {strides = array<i32>} : memref<1x8x32xf32, #tpu.memory_space<vmem>>, vector<1x8x32xf32>,
    return
  }
  func.func @transform_0(%arg0: i32) -> (i32, i32, i32) {
    %c0_i32 = arith.constant 0 : i32
    %c0_i32_0 = arith.constant 0 : i32
    %c0_i32_1 = arith.constant 0 : i32
    return %arg0, %c0_i32, %c0_i32_0 : i32, i32, i32
  }
  func.func @transform_1(%arg0: i32) -> (i32, i32) {
    %c0_i32 = arith.constant 0 : i32
    %c0_i32_0 = arith.constant 0 : i32
    %c0_i32_1 = arith.constant 0 : i32
    return %c0_i32, %c0_i32_0 : i32, i32
  }
  func.func @transform_2(%arg0: i32) -> (i32, i32) {
    %c0_i32 = arith.constant 0 : i32
    %c0_i32_0 = arith.constant 0 : i32
    %c0_i32_1 = arith.constant 0 : i32
    return %c0_i32, %c0_i32_0 : i32, i32
  }
  func.func @transform_3(%arg0: i32) -> (i32, i32) {
    %c0_i32 = arith.constant 0 : i32
    %c0_i32_0 = arith.constant 0 : i32
    %c0_i32_1 = arith.constant 0 : i32
    return %c0_i32, %c0_i32_0 : i32, i32
  }
  func.func @transform_4(%arg0: i32) -> (i32, i32) {
    %c0_i32 = arith.constant 0 : i32
    %c0_i32_0 = arith.constant 0 : i32
    %c0_i32_1 = arith.constant 0 : i32
    return %c0_i32, %c0_i32_0 : i32, i32
  }
  func.func @transform_5(%arg0: i32) -> (i32, i32) {
    %c0_i32 = arith.constant 0 : i32
    %c0_i32_0 = arith.constant 0 : i32
    %c0_i32_1 = arith.constant 0 : i32
    return %c0_i32, %c0_i32_0 : i32, i32
  }
  func.func @transform_6(%arg0: i32) -> (i32, i32) {
    %c0_i32 = arith.constant 0 : i32
    %c0_i32_0 = arith.constant 0 : i32
    %c0_i32_1 = arith.constant 0 : i32
    return %c0_i32, %c0_i32_0 : i32, i32
  }
  func.func @transform_7(%arg0: i32) -> (i32, i32) {
    %c0_i32 = arith.constant 0 : i32
    %c0_i32_0 = arith.constant 0 : i32
    %c0_i32_1 = arith.constant 0 : i32
    return %c0_i32, %c0_i32_0 : i32, i32
  }
  func.func @transform_8(%arg0: i32) -> (i32, i32) {
    %c0_i32 = arith.constant 0 : i32
    %c0_i32_0 = arith.constant 0 : i32
    %c0_i32_1 = arith.constant 0 : i32
    return %c0_i32, %c0_i32_0 : i32, i32
  }
  func.func @transform_9(%arg0: i32) -> (i32, i32, i32) {
    %c0_i32 = arith.constant 0 : i32
    %c0_i32_0 = arith.constant 0 : i32
    %c0_i32_1 = arith.constant 0 : i32
    return %arg0, %c0_i32, %c0_i32_0 : i32, i32, i32
  }
}

</mosaic_0001>

<llo_original>
// kernel: tpu_custom_call.1
$region0: #{tpu_custom_call.1}
  #allocation0 [shape = 'u32[]', space=smem, size = 0x4, offset = 0x4, fixed_abs, tag = 'smem constant byte address 0x4 - core index']
  #allocation1 [shape = 'u32[144,128]{1,0:T(1,128)}', space=vmem, size = 0x12000, scoped, tag = 'internal scratch']
  #allocation2 [shape = 'bf16[8,96]{1,0:T(8,128)(2,1)}', space=vmem, size = 0x800, scoped, tag = 'scratch operand']
  #allocation3 [shape = 'bf16[8,32]{1,0:T(8,128)(2,1)}', space=vmem, size = 0x800, scoped, tag = 'scratch operand']
  %s0 = inlined_call_operand.vmem [shape: bf16[2,8,32], index: 0, kind: input, shape index: {}]
  %s1 = inlined_call_operand.vmem [shape: bf16[32,96], index: 1, kind: input, shape index: {}]
  %s2 = inlined_call_operand.vmem [shape: f32[1,96], index: 2, kind: input, shape index: {}]
  %s3 = inlined_call_operand.vmem [shape: bf16[32,32], index: 3, kind: input, shape index: {}]
  %s4 = inlined_call_operand.vmem [shape: f32[1,32], index: 4, kind: input, shape index: {}]
  %s5 = inlined_call_operand.vmem [shape: bf16[32,128], index: 5, kind: input, shape index: {}]
  %s6 = inlined_call_operand.vmem [shape: f32[1,128], index: 6, kind: input, shape index: {}]
  %s7 = inlined_call_operand.vmem [shape: bf16[128,32], index: 7, kind: input, shape index: {}]
  %s8 = inlined_call_operand.vmem [shape: f32[1,32], index: 8, kind: input, shape index: {}]
  %s9 = inlined_call_operand.hbm [shape: f32[2,8,32], index: 9, kind: output, shape index: {}]
  %s10 = sld [smem:[#allocation0]]
  $region69: #{tpu_custom_call.1} parent=0
    _
  %s12 = ssub.s32 1, %s10
  %s13 = scalar_select 0, %s12, %s10
  $region1: #{tpu_custom_call.1} parent=0
    #allocation4 [shape = 'u8[8192]{0}', space=vmem, size = 0x2000, scoped, tag = 'output window, operand 0']
    #allocation5 [shape = 's32[2]{0}', space=sflag, size = 0x8, scoped, tag = 'scoped memory for tpu_custom_call.1']
    %14 = vsyncpa [#allocation5], 0
    %s15 = scalar_lea.sflag [#allocation5], 1
    %16 = vsyncpa %s15, 0
    loop: start=0, step=1, limit=4
    $region2: #{tpu_custom_call.1} parent=1 // loop_pre_header
      _
    $region3: #{tpu_custom_call.1} parent=1 // loop_header
      %s18 = sphi 0, %s22
      %p19 = scmp.ge.s32.totalorder %s18, 4
      %s28 = sphi 0, %s30
      %s31 = sphi 0, %s28
      %s32 = sphi 0, %s31
      %s48 = sphi 0, %s32
      %s52 = sphi 0, %s52
      %s54 = sphi 0, %s52
      %s55 = sphi 0, %s54
      %s69 = sphi 0, %s55
      %s73 = sphi 0, %s73
      %s75 = sphi 0, %s73
      %s76 = sphi 0, %s75
      %s90 = sphi 0, %s76
      %s94 = sphi 0, %s94
      %s96 = sphi 0, %s94
      %s97 = sphi 0, %s96
      %s111 = sphi 0, %s97
      %s115 = sphi 0, %s115
      %s117 = sphi 0, %s115
      %s118 = sphi 0, %s117
      %s132 = sphi 0, %s118
      %s136 = sphi 0, %s136
      %s138 = sphi 0, %s136
      %s139 = sphi 0, %s138
      %s153 = sphi 0, %s139
      %s157 = sphi 0, %s157
      %s159 = sphi 0, %s157
      %s160 = sphi 0, %s159
      %s174 = sphi 0, %s160
      %s178 = sphi 0, %s178
      %s180 = sphi 0, %s178
      %s181 = sphi 0, %s180
      %s195 = sphi 0, %s181
      %s199 = sphi 0, %s199
      %s201 = sphi 0, %s199
      %s202 = sphi 0, %s201
      %s216 = sphi 0, %s202
      %s222 = sphi 0, %s224
      %s225 = sphi 0, %s222
      %s226 = sphi 0, %s225
      %s242 = sphi 0, %s226
    $region4: #{tpu_custom_call.1} parent=1 // loop_header_branch
      %21 = sbr.rel (%p19) target = $region8
    $region5: #{tpu_custom_call.1} parent=1 // loop_body
      %s23 = ssub.s32 %s18, 1
      %s24 = ssub.s32 %s18, 2
      %s25 = sadd.s32 %s18, 1
      %s26 = ssub.s32 %s18, %s25
      %p27 = scmp.eq.s32.totalorder %s26, 0
      %s29 = sadd.s32 %s28, 1
      %s30 = scalar_select %p27, %s28, %s29
      %p33 = pneg %p27
      %p34 = scmp.eq.s32.totalorder %s18, 1
      %p35 = por %p33, %p34
      %p36 = scmp.ne.s32.totalorder %s28, %s31
      %p37 = scmp.eq.s32.totalorder %s18, 0
      %p38 = por %p36, %p37
      %p39 = scmp.ne.s32.totalorder %s28, %s31
      %p40 = scmp.eq.s32.totalorder %s23, 1
      %p41 = por %p39, %p40
      %p42 = scmp.ne.s32.totalorder %s31, %s32
      %p43 = scmp.eq.s32.totalorder %s23, 0
      %p44 = por %p42, %p43
      %p45 = scmp.ne.s32.totalorder %s31, %s32
      %p46 = scmp.eq.s32.totalorder %s24, 1
      %p47 = por %p45, %p46
      %p49 = scmp.ne.s32.totalorder %s32, %s48
      %p50 = scmp.eq.s32.totalorder %s24, 0
      %p51 = por %p49, %p50
      %s53 = sadd.s32 %s52, 1
      %p56 = scmp.eq.s32.totalorder %s18, 1
      %p57 = scmp.ne.s32.totalorder %s52, %s54
      %p58 = scmp.eq.s32.totalorder %s18, 0
      %p59 = por %p57, %p58
      %p60 = scmp.ne.s32.totalorder %s52, %s54
      %p61 = scmp.eq.s32.totalorder %s23, 1
      %p62 = por %p60, %p61
      %p63 = scmp.ne.s32.totalorder %s54, %s55
      %p64 = scmp.eq.s32.totalorder %s23, 0
      %p65 = por %p63, %p64
      %p66 = scmp.ne.s32.totalorder %s54, %s55
      %p67 = scmp.eq.s32.totalorder %s24, 1
      %p68 = por %p66, %p67
      %p70 = scmp.ne.s32.totalorder %s55, %s69
      %p71 = scmp.eq.s32.totalorder %s24, 0
      %p72 = por %p70, %p71
      %s74 = sadd.s32 %s73, 1
      %p77 = scmp.eq.s32.totalorder %s18, 1
      %p78 = scmp.ne.s32.totalorder %s73, %s75
      %p79 = scmp.eq.s32.totalorder %s18, 0
      %p80 = por %p78, %p79
      %p81 = scmp.ne.s32.totalorder %s73, %s75
      %p82 = scmp.eq.s32.totalorder %s23, 1
      %p83 = por %p81, %p82
      %p84 = scmp.ne.s32.totalorder %s75, %s76
      %p85 = scmp.eq.s32.totalorder %s23, 0
      %p86 = por %p84, %p85
      %p87 = scmp.ne.s32.totalorder %s75, %s76
      %p88 = scmp.eq.s32.totalorder %s24, 1
      %p89 = por %p87, %p88
      %p91 = scmp.ne.s32.totalorder %s76, %s90
      %p92 = scmp.eq.s32.totalorder %s24, 0
      %p93 = por %p91, %p92
      %s95 = sadd.s32 %s94, 1
      %p98 = scmp.eq.s32.totalorder %s18, 1
      %p99 = scmp.ne.s32.totalorder %s94, %s96
      %p100 = scmp.eq.s32.totalorder %s18, 0
      %p101 = por %p99, %p100
      %p102 = scmp.ne.s32.totalorder %s94, %s96
      %p103 = scmp.eq.s32.totalorder %s23, 1
      %p104 = por %p102, %p103
      %p105 = scmp.ne.s32.totalorder %s96, %s97
      %p106 = scmp.eq.s32.totalorder %s23, 0
      %p107 = por %p105, %p106
      %p108 = scmp.ne.s32.totalorder %s96, %s97
      %p109 = scmp.eq.s32.totalorder %s24, 1
      %p110 = por %p108, %p109
      %p112 = scmp.ne.s32.totalorder %s97, %s111
      %p113 = scmp.eq.s32.totalorder %s24, 0
      %p114 = por %p112, %p113
      %s116 = sadd.s32 %s115, 1
      %p119 = scmp.eq.s32.totalorder %s18, 1
      %p120 = scmp.ne.s32.totalorder %s115, %s117
      %p121 = scmp.eq.s32.totalorder %s18, 0
      %p122 = por %p120, %p121
      %p123 = scmp.ne.s32.totalorder %s115, %s117
      %p124 = scmp.eq.s32.totalorder %s23, 1
      %p125 = por %p123, %p124
      %p126 = scmp.ne.s32.totalorder %s117, %s118
      %p127 = scmp.eq.s32.totalorder %s23, 0
      %p128 = por %p126, %p127
      %p129 = scmp.ne.s32.totalorder %s117, %s118
      %p130 = scmp.eq.s32.totalorder %s24, 1
      %p131 = por %p129, %p130
      %p133 = scmp.ne.s32.totalorder %s118, %s132
      %p134 = scmp.eq.s32.totalorder %s24, 0
      %p135 = por %p133, %p134
      %s137 = sadd.s32 %s136, 1
      %p140 = scmp.eq.s32.totalorder %s18, 1
      %p141 = scmp.ne.s32.totalorder %s136, %s138
      %p142 = scmp.eq.s32.totalorder %s18, 0
      %p143 = por %p141, %p142
      %p144 = scmp.ne.s32.totalorder %s136, %s138
      %p145 = scmp.eq.s32.totalorder %s23, 1
      %p146 = por %p144, %p145
      %p147 = scmp.ne.s32.totalorder %s138, %s139
      %p148 = scmp.eq.s32.totalorder %s23, 0
      %p149 = por %p147, %p148
      %p150 = scmp.ne.s32.totalorder %s138, %s139
      %p151 = scmp.eq.s32.totalorder %s24, 1
      %p152 = por %p150, %p151
      %p154 = scmp.ne.s32.totalorder %s139, %s153
      %p155 = scmp.eq.s32.totalorder %s24, 0
      %p156 = por %p154, %p155
      %s158 = sadd.s32 %s157, 1
      %p161 = scmp.eq.s32.totalorder %s18, 1
      %p162 = scmp.ne.s32.totalorder %s157, %s159
      %p163 = scmp.eq.s32.totalorder %s18, 0
      %p164 = por %p162, %p163
      %p165 = scmp.ne.s32.totalorder %s157, %s159
      %p166 = scmp.eq.s32.totalorder %s23, 1
      %p167 = por %p165, %p166
      %p168 = scmp.ne.s32.totalorder %s159, %s160
      %p169 = scmp.eq.s32.totalorder %s23, 0
      %p170 = por %p168, %p169
      %p171 = scmp.ne.s32.totalorder %s159, %s160
      %p172 = scmp.eq.s32.totalorder %s24, 1
      %p173 = por %p171, %p172
      %p175 = scmp.ne.s32.totalorder %s160, %s174
      %p176 = scmp.eq.s32.totalorder %s24, 0
      %p177 = por %p175, %p176
      %s179 = sadd.s32 %s178, 1
      %p182 = scmp.eq.s32.totalorder %s18, 1
      %p183 = scmp.ne.s32.totalorder %s178, %s180
      %p184 = scmp.eq.s32.totalorder %s18, 0
      %p185 = por %p183, %p184
      %p186 = scmp.ne.s32.totalorder %s178, %s180
      %p187 = scmp.eq.s32.totalorder %s23, 1
      %p188 = por %p186, %p187
      %p189 = scmp.ne.s32.totalorder %s180, %s181
      %p190 = scmp.eq.s32.totalorder %s23, 0
      %p191 = por %p189, %p190
      %p192 = scmp.ne.s32.totalorder %s180, %s181
      %p193 = scmp.eq.s32.totalorder %s24, 1
      %p194 = por %p192, %p193
      %p196 = scmp.ne.s32.totalorder %s181, %s195
      %p197 = scmp.eq.s32.totalorder %s24, 0
      %p198 = por %p196, %p197
      %s200 = sadd.s32 %s199, 1
      %p203 = scmp.eq.s32.totalorder %s18, 1
      %p204 = scmp.ne.s32.totalorder %s199, %s201
      %p205 = scmp.eq.s32.totalorder %s18, 0
      %p206 = por %p204, %p205
      %p207 = scmp.ne.s32.totalorder %s199, %s201
      %p208 = scmp.eq.s32.totalorder %s23, 1
      %p209 = por %p207, %p208
      %p210 = scmp.ne.s32.totalorder %s201, %s202
      %p211 = scmp.eq.s32.totalorder %s23, 0
      %p212 = por %p210, %p211
      %p213 = scmp.ne.s32.totalorder %s201, %s202
      %p214 = scmp.eq.s32.totalorder %s24, 1
      %p215 = por %p213, %p214
      %p217 = scmp.ne.s32.totalorder %s202, %s216
      %p218 = scmp.eq.s32.totalorder %s24, 0
      %p219 = por %p217, %p218
      %s220 = ssub.s32 %s18, %s25
      %p221 = scmp.eq.s32.totalorder %s220, 0
      %s223 = sadd.s32 %s222, 1
      %s224 = scalar_select %p221, %s222, %s223
      %p227 = pneg %p221
      %p228 = scmp.eq.s32.totalorder %s18, 1
      %p229 = por %p227, %p228
      %p230 = scmp.ne.s32.totalorder %s222, %s225
      %p231 = scmp.eq.s32.totalorder %s18, 0
      %p232 = por %p230, %p231
      %p233 = scmp.ne.s32.totalorder %s222, %s225
      %p234 = scmp.eq.s32.totalorder %s23, 1
      %p235 = por %p233, %p234
      %p236 = scmp.ne.s32.totalorder %s225, %s226
      %p237 = scmp.eq.s32.totalorder %s23, 0
      %p238 = por %p236, %p237
      %p239 = scmp.ne.s32.totalorder %s225, %s226
      %p240 = scmp.eq.s32.totalorder %s24, 1
      %p241 = por %p239, %p240
      %p243 = scmp.ne.s32.totalorder %s226, %s242
      %p244 = scmp.eq.s32.totalorder %s24, 0
      %p245 = por %p243, %p244
      %p246 = scmp.le.s32.totalorder 1, %s18
      %p247 = scmp.lt.s32.totalorder %s18, 3
      %p248 = pnand %p246, %p247
      %p249 = pneg %p248
      // Predicated region
      $region9: #{tpu_custom_call.1} parent=5 // pred_check
        _
      $region10: #{tpu_custom_call.1} parent=5 // pred_check_branch
        %251 = sbr.rel (%p248) target = $region12
      $region11: #{tpu_custom_call.1} parent=5 // pred_region
        %s252 = ssub.s32 %s18, 1
        // Predicated region
        $region13: #{tpu_custom_call.1} parent=11 // pred_check
          %p253 = pneg %p65
        $region14: #{tpu_custom_call.1} parent=11 // pred_check_branch
          %255 = sbr.rel (%p253) target = $region16
        $region15: #{tpu_custom_call.1} parent=11 // pred_region
          _
        $region16: #{tpu_custom_call.1} parent=11 // pred_fallthru
          _
        // Predicated region
        $region17: #{tpu_custom_call.1} parent=11 // pred_check
          %p256 = pneg %p86
        $region18: #{tpu_custom_call.1} parent=11 // pred_check_branch
          %258 = sbr.rel (%p256) target = $region20
        $region19: #{tpu_custom_call.1} parent=11 // pred_region
          _
        $region20: #{tpu_custom_call.1} parent=11 // pred_fallthru
          _
        // Predicated region
        $region21: #{tpu_custom_call.1} parent=11 // pred_check
          %p259 = pneg %p107
        $region22: #{tpu_custom_call.1} parent=11 // pred_check_branch
          %261 = sbr.rel (%p259) target = $region24
        $region23: #{tpu_custom_call.1} parent=11 // pred_region
          _
        $region24: #{tpu_custom_call.1} parent=11 // pred_fallthru
          _
        // Predicated region
        $region25: #{tpu_custom_call.1} parent=11 // pred_check
          %p262 = pneg %p128
        $region26: #{tpu_custom_call.1} parent=11 // pred_check_branch
          %264 = sbr.rel (%p262) target = $region28
        $region27: #{tpu_custom_call.1} parent=11 // pred_region
          _
        $region28: #{tpu_custom_call.1} parent=11 // pred_fallthru
          _
        // Predicated region
        $region29: #{tpu_custom_call.1} parent=11 // pred_check
          %p265 = pneg %p149
        $region30: #{tpu_custom_call.1} parent=11 // pred_check_branch
          %267 = sbr.rel (%p265) target = $region32
        $region31: #{tpu_custom_call.1} parent=11 // pred_region
          _
        $region32: #{tpu_custom_call.1} parent=11 // pred_fallthru
          _
        // Predicated region
        $region33: #{tpu_custom_call.1} parent=11 // pred_check
          %p268 = pneg %p170
        $region34: #{tpu_custom_call.1} parent=11 // pred_check_branch
          %270 = sbr.rel (%p268) target = $region36
        $region35: #{tpu_custom_call.1} parent=11 // pred_region
          _
        $region36: #{tpu_custom_call.1} parent=11 // pred_fallthru
          _
        // Predicated region
        $region37: #{tpu_custom_call.1} parent=11 // pred_check
          %p271 = pneg %p191
        $region38: #{tpu_custom_call.1} parent=11 // pred_check_branch
          %273 = sbr.rel (%p271) target = $region40
        $region39: #{tpu_custom_call.1} parent=11 // pred_region
          _
        $region40: #{tpu_custom_call.1} parent=11 // pred_fallthru
          _
        // Predicated region
        $region41: #{tpu_custom_call.1} parent=11 // pred_check
          %p274 = pneg %p212
        $region42: #{tpu_custom_call.1} parent=11 // pred_check_branch
          %276 = sbr.rel (%p274) target = $region44
        $region43: #{tpu_custom_call.1} parent=11 // pred_region
          _
        $region44: #{tpu_custom_call.1} parent=11 // pred_fallthru
          _
      $region12: #{tpu_custom_call.1} parent=5 // pred_fallthru
        _
      %p277 = scmp.lt.s32.totalorder %s18, 2
      // Predicated region
      $region45: #{tpu_custom_call.1} parent=5 // pred_check
        %p278 = pneg %p277
      $region46: #{tpu_custom_call.1} parent=5 // pred_check_branch
        %280 = sbr.rel (%p278) target = $region48
      $region47: #{tpu_custom_call.1} parent=5 // pred_region
        // Predicated region
        $region49: #{tpu_custom_call.1} parent=47 // pred_check
          %p281 = pneg %p38
        $region50: #{tpu_custom_call.1} parent=47 // pred_check_branch
          %283 = sbr.rel (%p281) target = $region52
        $region51: #{tpu_custom_call.1} parent=47 // pred_region
          %p284 = scmp.lt.s32.totalorder %s18, 1
          %s285 = scalar_select %p284, %s18, 1
          %s286 = smul.addr %s285, 4
          %s287 = scalar_lea.vmem %s0, %s286
        $region52: #{tpu_custom_call.1} parent=47 // pred_fallthru
          _
      $region48: #{tpu_custom_call.1} parent=5 // pred_fallthru
        _
      %p288 = scmp.le.s32.totalorder 1, %s18
      %p289 = scmp.lt.s32.totalorder %s18, 3
      %p290 = pnand %p288, %p289
      %p291 = pneg %p290
      // Predicated region
      $region53: #{tpu_custom_call.1} parent=5 // pred_check
        _
      $region54: #{tpu_custom_call.1} parent=5 // pred_check_branch
        %293 = sbr.rel (%p290) target = $region56
      $region55: #{tpu_custom_call.1} parent=5 // pred_region
        %s294 = ssub.s32 %s18, 1
        %p295 = scmp.lt.s32.totalorder %s23, 1
        %s296 = scalar_select %p295, %s23, 1
        %s297 = smul.addr %s296, 4
        %s298 = scalar_lea.vmem %s0, %s297
        %p299 = pneg %p44
        %p300 = pneg %p41
        %p301 = pneg %p65
        %p302 = pneg %p62
        %p303 = pneg %p86
        %p304 = pneg %p83
        %p305 = pneg %p107
        %p306 = pneg %p104
        %p307 = pneg %p128
        %p308 = pneg %p125
        %p309 = pneg %p149
        %p310 = pneg %p146
        %p311 = pneg %p170
        %p312 = pneg %p167
        %p313 = pneg %p191
        %p314 = pneg %p188
        %p315 = pneg %p212
        %p316 = pneg %p209
        %p317 = pneg %p238
        %p318 = pneg %p235
        %s319 = sand.u32 %s225, 1
        %s320 = scalar_lea.sflag [#allocation5], %s319
        %s321 = sand.u32 %s225, 1
        %s322 = smul.addr %s321, 8
        %s323 = scalar_lea.vmem [#allocation4], %s322
        %p324 = scmp.lt.s32.totalorder %s23, 1
        %s325 = scalar_select %p324, %s23, 1
        %s326 = smul.addr %s325, 4
        %s327 = scalar_lea.vmem %s0, %s326
        %v329 = vld [vmem:[%s327] sm:$0xf]
        %v330 = vld [vmem:[%s1] sm:$0xf]
        %v331 = vld [vmem:[%s1 + $0x4] sm:$0xf]
        %v332 = vld [vmem:[%s1 + $0x8] sm:$0xf]
        %v333 = vld [vmem:[%s1 + $0xc] sm:$0xf]
        %v334 = vld [vmem:[%s2] sm:$0x1]
        %v336 = vlaneseq
        %v337 = vshrl.u32 %v336, 7
        %v338 = vsub.s32 0, %v337
        %v339 = vrot.slane %v334, %v338
        %v345 = vunpack.c.l.b16 %v330
        %v346 = vunpack.c.l.b16 %v331
        %v347 = vunpack.c.l.b16 %v332
        %v348 = vunpack.c.l.b16 %v333
        %v349 = vpack.c.b16 %v346, %v345
        %v350 = vpack.c.b16 %v348, %v347
        %vm353 = vcmask 261120
        %v355 = vsel %vm353, %v329, 0
        %357 = vmatprep.subr.bf16.mxu0 0
        %358 = vmatpush1.bf16.msra.mxu0 %v349
        %359 = vmatprep.subr.bf16.mxu0 0
        %360 = vmatpush1.bf16.msra.mxu0 %v350
        %361 = vmatprep.subr.bf16.mxu0 0
        %362 = vmatpush1.bf16.msra.mxu0 0
        %363 = vmatprep.subr.bf16.mxu0 0
        %364 = vmatpush1.bf16.msra.mxu0 0
        %365 = vmatprep.subr.bf16.mxu0 0
        %366 = vmatpush1.bf16.msra.mxu0 0
        %367 = vmatprep.subr.bf16.mxu0 0
        %368 = vmatpush1.bf16.msra.mxu0 0
        %369 = vmatprep.subr.bf16.mxu0 0
        %370 = vmatpush1.bf16.msra.mxu0 0
        %371 = vmatprep.subr.bf16.mxu0 0
        %372 = vmatpush1.bf16.msra.mxu0 0
        %373 = vmatprep.subr.bf16.mxu0 0
        %374 = vmatpush1.bf16.msra.mxu0 0
        %375 = vmatprep.subr.bf16.mxu0 0
        %376 = vmatpush1.bf16.msra.mxu0 0
        %377 = vmatprep.subr.bf16.mxu0 0
        %378 = vmatpush1.bf16.msra.mxu0 0
        %379 = vmatprep.subr.bf16.mxu0 0
        %380 = vmatpush1.bf16.msra.mxu0 0
        %381 = vmatprep.subr.bf16.mxu0 0
        %382 = vmatpush1.bf16.msra.mxu0 0
        %383 = vmatprep.subr.bf16.mxu0 0
        %384 = vmatpush1.bf16.msra.mxu0 0
        %385 = vmatprep.subr.bf16.mxu0 0
        %386 = vmatpush1.bf16.msra.mxu0 0
        %387 = vmatprep.subr.bf16.mxu0 0
        %388 = vmatpush1.bf16.msra.mxu0 0
        %389 = vmatprep.mubr.bf16.mxu0 0
        %390 = vmatmul.mubr.bf16.gmra.mrb[0].mxu0 %v355
        %v391 = vpop.f32.mrb[0].mxu0
        %v392 = vadd.f32 %v339, %v391
        %v393 = vpop.f32.mrb[0].mxu0
        %v394 = vpop.f32.mrb[0].mxu0
        %v395 = vpop.f32.mrb[0].mxu0
        %396 = vdwg.mxu0
        %v397 = vpack.c.bf16 %v392, %v392
        %vm398 = vcmask 781312
        %399 = vst.msk [vmem:[#allocation2] sm:$0xf] %vm398, %v397
        %v400 = vld [vmem:[#allocation2] sm:$0xf]
        %v402 = vunpack.c.l.b16 %v400
        %v403 = vpack.c.b16 %v402, %v402
        %404 = vrot.lane.b32.xlu0 %v403, 96
        %v405 = vpop.permute.xlu0 %404
        %vm406 = vcmask 64512
        %v408 = vsel %vm406, %v400, 0
        %v411 = vsel %vm406, %v405, 0
        %413 = vmatprep.subr.bf16.mxu0 0
        %414 = vmatpush1.bf16.xpose.msra.mxu0 %v411
        %415 = vmatprep.subr.bf16.mxu0 0
        %416 = vmatpush1.bf16.xpose.msra.mxu0 0
        %417 = vmatprep.subr.bf16.mxu0 0
        %418 = vmatpush1.bf16.xpose.msra.mxu0 0
        %419 = vmatprep.subr.bf16.mxu0 0
        %420 = vmatpush1.bf16.xpose.msra.mxu0 0
        %421 = vmatprep.subr.bf16.mxu0 0
        %422 = vmatpush1.bf16.xpose.msra.mxu0 0
        %423 = vmatprep.subr.bf16.mxu0 0
        %424 = vmatpush1.bf16.xpose.msra.mxu0 0
        %425 = vmatprep.subr.bf16.mxu0 0
        %426 = vmatpush1.bf16.xpose.msra.mxu0 0
        %427 = vmatprep.subr.bf16.mxu0 0
        %428 = vmatpush1.bf16.xpose.msra.mxu0 0
        %429 = vmatprep.subr.bf16.mxu0 0
        %430 = vmatpush1.bf16.xpose.msra.mxu0 0
        %431 = vmatprep.subr.bf16.mxu0 0
        %432 = vmatpush1.bf16.xpose.msra.mxu0 0
        %433 = vmatprep.subr.bf16.mxu0 0
        %434 = vmatpush1.bf16.xpose.msra.mxu0 0
        %435 = vmatprep.subr.bf16.mxu0 0
        %436 = vmatpush1.bf16.xpose.msra.mxu0 0
        %437 = vmatprep.subr.bf16.mxu0 0
        %438 = vmatpush1.bf16.xpose.msra.mxu0 0
        %439 = vmatprep.subr.bf16.mxu0 0
        %440 = vmatpush1.bf16.xpose.msra.mxu0 0
        %441 = vmatprep.subr.bf16.mxu0 0
        %442 = vmatpush1.bf16.xpose.msra.mxu0 0
        %443 = vmatprep.subr.bf16.mxu0 0
        %444 = vmatpush1.bf16.xpose.msra.mxu0 0
        %445 = vmatprep.mubr.bf16.mxu0 0
        %446 = vmatmul.mubr.bf16.gmra.mrb[0].mxu0 %v408
        %v447 = vpop.f32.mrb[0].mxu0
        %v448 = vadd.f32 0.0, %v447
        %v449 = vpop.f32.mrb[0].mxu0
        %v450 = vpop.f32.mrb[0].mxu0
        %v451 = vpop.f32.mrb[0].mxu0
        %452 = vdwg.mxu0
        %v453 = vsel %vm406, %v448, -inf
        %454 = vmax.xlane.f32.xlu0 %v453
        %v455 = vpop.xlane.xlu0 %454
        %v456 = vsub.f32 %v448, %v455
        %v457 = vmul.f32 %v456, 1.442695
        %v458 = vpow.pop %v457
        %v459 = vsel %vm406, %v458, 0.0
        %460 = vadd.xlane.f32.xlu0 %v459
        %v461 = vpop.xlane.xlu0 %460
        %v462 = vrcp.pop %v461
        %v463 = vmul.f32 %v458, %v462
        %v464 = vpack.c.bf16 %v463, %v463
        %465 = vrot.lane.b32.xlu0 %v403, 64
        %v466 = vpop.permute.xlu0 %465
        %v468 = vsel %vm406, %v464, 0
        %vm470 = vcmask 1043456
        %v472 = vsel %vm470, %v466, 0
        %474 = vmatprep.subr.bf16.mxu0 0
        %475 = vmatpush1.bf16.msra.mxu0 %v472
        %476 = vmatprep.subr.bf16.mxu0 0
        %477 = vmatpush1.bf16.msra.mxu0 0
        %478 = vmatprep.subr.bf16.mxu0 0
        %479 = vmatpush1.bf16.msra.mxu0 0
        %480 = vmatprep.subr.bf16.mxu0 0
        %481 = vmatpush1.bf16.msra.mxu0 0
        %482 = vmatprep.subr.bf16.mxu0 0
        %483 = vmatpush1.bf16.msra.mxu0 0
        %484 = vmatprep.subr.bf16.mxu0 0
        %485 = vmatpush1.bf16.msra.mxu0 0
        %486 = vmatprep.subr.bf16.mxu0 0
        %487 = vmatpush1.bf16.msra.mxu0 0
        %488 = vmatprep.subr.bf16.mxu0 0
        %489 = vmatpush1.bf16.msra.mxu0 0
        %490 = vmatprep.subr.bf16.mxu0 0
        %491 = vmatpush1.bf16.msra.mxu0 0
        %492 = vmatprep.subr.bf16.mxu0 0
        %493 = vmatpush1.bf16.msra.mxu0 0
        %494 = vmatprep.subr.bf16.mxu0 0
        %495 = vmatpush1.bf16.msra.mxu0 0
        %496 = vmatprep.subr.bf16.mxu0 0
        %497 = vmatpush1.bf16.msra.mxu0 0
        %498 = vmatprep.subr.bf16.mxu0 0
        %499 = vmatpush1.bf16.msra.mxu0 0
        %500 = vmatprep.subr.bf16.mxu0 0
        %501 = vmatpush1.bf16.msra.mxu0 0
        %502 = vmatprep.subr.bf16.mxu0 0
        %503 = vmatpush1.bf16.msra.mxu0 0
        %504 = vmatprep.subr.bf16.mxu0 0
        %505 = vmatpush1.bf16.msra.mxu0 0
        %506 = vmatprep.mubr.bf16.mxu0 0
        %507 = vmatmul.mubr.bf16.gmra.mrb[0].mxu0 %v468
        %v508 = vpop.f32.mrb[0].mxu0
        %v509 = vadd.f32 0.0, %v508
        %v510 = vpop.f32.mrb[0].mxu0
        %v511 = vpop.f32.mrb[0].mxu0
        %v512 = vpop.f32.mrb[0].mxu0
        %513 = vdwg.mxu0
        %v514 = vpack.c.bf16 %v509, %v509
        %vm515 = vcmask 60416
        %516 = vst.msk [vmem:[#allocation3] sm:$0xf] %vm515, %v514
        %v517 = vld [vmem:[#allocation2] sm:$0xf]
        %v519 = vunpack.c.l.b16 %v517
        %v520 = vpack.c.b16 %v519, %v519
        %521 = vrot.lane.b32.xlu0 %v520, 120
        %v522 = vpop.permute.xlu0 %521
        %523 = vrot.lane.b32.xlu0 %v520, 88
        %v524 = vpop.permute.xlu0 %523
        %v526 = vsel %vm406, %v522, 0
        %v529 = vsel %vm406, %v524, 0
        %531 = vmatprep.subr.bf16.mxu0 0
        %532 = vmatpush1.bf16.xpose.msra.mxu0 %v529
        %533 = vmatprep.subr.bf16.mxu0 0
        %534 = vmatpush1.bf16.xpose.msra.mxu0 0
        %535 = vmatprep.subr.bf16.mxu0 0
        %536 = vmatpush1.bf16.xpose.msra.mxu0 0
        %537 = vmatprep.subr.bf16.mxu0 0
        %538 = vmatpush1.bf16.xpose.msra.mxu0 0
        %539 = vmatprep.subr.bf16.mxu0 0
        %540 = vmatpush1.bf16.xpose.msra.mxu0 0
        %541 = vmatprep.subr.bf16.mxu0 0
        %542 = vmatpush1.bf16.xpose.msra.mxu0 0
        %543 = vmatprep.subr.bf16.mxu0 0
        %544 = vmatpush1.bf16.xpose.msra.mxu0 0
        %545 = vmatprep.subr.bf16.mxu0 0
        %546 = vmatpush1.bf16.xpose.msra.mxu0 0
        %547 = vmatprep.subr.bf16.mxu0 0
        %548 = vmatpush1.bf16.xpose.msra.mxu0 0
        %549 = vmatprep.subr.bf16.mxu0 0
        %550 = vmatpush1.bf16.xpose.msra.mxu0 0
        %551 = vmatprep.subr.bf16.mxu0 0
        %552 = vmatpush1.bf16.xpose.msra.mxu0 0
        %553 = vmatprep.subr.bf16.mxu0 0
        %554 = vmatpush1.bf16.xpose.msra.mxu0 0
        %555 = vmatprep.subr.bf16.mxu0 0
        %556 = vmatpush1.bf16.xpose.msra.mxu0 0
        %557 = vmatprep.subr.bf16.mxu0 0
        %558 = vmatpush1.bf16.xpose.msra.mxu0 0
        %559 = vmatprep.subr.bf16.mxu0 0
        %560 = vmatpush1.bf16.xpose.msra.mxu0 0
        %561 = vmatprep.subr.bf16.mxu0 0
        %562 = vmatpush1.bf16.xpose.msra.mxu0 0
        %563 = vmatprep.mubr.bf16.mxu0 0
        %564 = vmatmul.mubr.bf16.gmra.mrb[0].mxu0 %v526
        %v565 = vpop.f32.mrb[0].mxu0
        %v566 = vadd.f32 0.0, %v565
        %v567 = vpop.f32.mrb[0].mxu0
        %v568 = vpop.f32.mrb[0].mxu0
        %v569 = vpop.f32.mrb[0].mxu0
        %570 = vdwg.mxu0
        %v571 = vsel %vm406, %v566, -inf
        %572 = vmax.xlane.f32.xlu0 %v571
        %v573 = vpop.xlane.xlu0 %572
        %v574 = vsub.f32 %v566, %v573
        %v575 = vmul.f32 %v574, 1.442695
        %v576 = vpow.pop %v575
        %v577 = vsel %vm406, %v576, 0.0
        %578 = vadd.xlane.f32.xlu0 %v577
        %v579 = vpop.xlane.xlu0 %578
        %v580 = vrcp.pop %v579
        %v581 = vmul.f32 %v576, %v580
        %v582 = vpack.c.bf16 %v581, %v581
        %583 = vrot.lane.b32.xlu0 %v520, 56
        %v584 = vpop.permute.xlu0 %583
        %v586 = vsel %vm406, %v582, 0
        %v589 = vsel %vm470, %v584, 0
        %591 = vmatprep.subr.bf16.mxu0 0
        %592 = vmatpush1.bf16.msra.mxu0 %v589
        %593 = vmatprep.subr.bf16.mxu0 0
        %594 = vmatpush1.bf16.msra.mxu0 0
        %595 = vmatprep.subr.bf16.mxu0 0
        %596 = vmatpush1.bf16.msra.mxu0 0
        %597 = vmatprep.subr.bf16.mxu0 0
        %598 = vmatpush1.bf16.msra.mxu0 0
        %599 = vmatprep.subr.bf16.mxu0 0
        %600 = vmatpush1.bf16.msra.mxu0 0
        %601 = vmatprep.subr.bf16.mxu0 0
        %602 = vmatpush1.bf16.msra.mxu0 0
        %603 = vmatprep.subr.bf16.mxu0 0
        %604 = vmatpush1.bf16.msra.mxu0 0
        %605 = vmatprep.subr.bf16.mxu0 0
        %606 = vmatpush1.bf16.msra.mxu0 0
        %607 = vmatprep.subr.bf16.mxu0 0
        %608 = vmatpush1.bf16.msra.mxu0 0
        %609 = vmatprep.subr.bf16.mxu0 0
        %610 = vmatpush1.bf16.msra.mxu0 0
        %611 = vmatprep.subr.bf16.mxu0 0
        %612 = vmatpush1.bf16.msra.mxu0 0
        %613 = vmatprep.subr.bf16.mxu0 0
        %614 = vmatpush1.bf16.msra.mxu0 0
        %615 = vmatprep.subr.bf16.mxu0 0
        %616 = vmatpush1.bf16.msra.mxu0 0
        %617 = vmatprep.subr.bf16.mxu0 0
        %618 = vmatpush1.bf16.msra.mxu0 0
        %619 = vmatprep.subr.bf16.mxu0 0
        %620 = vmatpush1.bf16.msra.mxu0 0
        %621 = vmatprep.subr.bf16.mxu0 0
        %622 = vmatpush1.bf16.msra.mxu0 0
        %623 = vmatprep.mubr.bf16.mxu0 0
        %624 = vmatmul.mubr.bf16.gmra.mrb[0].mxu0 %v586
        %v625 = vpop.f32.mrb[0].mxu0
        %v626 = vadd.f32 0.0, %v625
        %v627 = vpop.f32.mrb[0].mxu0
        %v628 = vpop.f32.mrb[0].mxu0
        %v629 = vpop.f32.mrb[0].mxu0
        %630 = vdwg.mxu0
        %v631 = vpack.c.bf16 %v626, %v626
        %v633 = vunpack.c.l.b16 %v631
        %v634 = vpack.c.b16 %v633, %v633
        %635 = vrot.lane.b32.xlu0 %v634, 8
        %v636 = vpop.permute.xlu0 %635
        %vm638 = vcmask 126016
        %639 = vst.msk [vmem:[#allocation3] sm:$0xf] %vm638, %v636
        %v640 = vld [vmem:[#allocation2] sm:$0xf]
        %v642 = vunpack.c.l.b16 %v640
        %v643 = vpack.c.b16 %v642, %v642
        %644 = vrot.lane.b32.xlu0 %v643, 112
        %v645 = vpop.permute.xlu0 %644
        %646 = vrot.lane.b32.xlu0 %v643, 80
        %v647 = vpop.permute.xlu0 %646
        %v649 = vsel %vm406, %v645, 0
        %v652 = vsel %vm406, %v647, 0
        %654 = vmatprep.subr.bf16.mxu0 0
        %655 = vmatpush1.bf16.xpose.msra.mxu0 %v652
        %656 = vmatprep.subr.bf16.mxu0 0
        %657 = vmatpush1.bf16.xpose.msra.mxu0 0
        %658 = vmatprep.subr.bf16.mxu0 0
        %659 = vmatpush1.bf16.xpose.msra.mxu0 0
        %660 = vmatprep.subr.bf16.mxu0 0
        %661 = vmatpush1.bf16.xpose.msra.mxu0 0
        %662 = vmatprep.subr.bf16.mxu0 0
        %663 = vmatpush1.bf16.xpose.msra.mxu0 0
        %664 = vmatprep.subr.bf16.mxu0 0
        %665 = vmatpush1.bf16.xpose.msra.mxu0 0
        %666 = vmatprep.subr.bf16.mxu0 0
        %667 = vmatpush1.bf16.xpose.msra.mxu0 0
        %668 = vmatprep.subr.bf16.mxu0 0
        %669 = vmatpush1.bf16.xpose.msra.mxu0 0
        %670 = vmatprep.subr.bf16.mxu0 0
        %671 = vmatpush1.bf16.xpose.msra.mxu0 0
        %672 = vmatprep.subr.bf16.mxu0 0
        %673 = vmatpush1.bf16.xpose.msra.mxu0 0
        %674 = vmatprep.subr.bf16.mxu0 0
        %675 = vmatpush1.bf16.xpose.msra.mxu0 0
        %676 = vmatprep.subr.bf16.mxu0 0
        %677 = vmatpush1.bf16.xpose.msra.mxu0 0
        %678 = vmatprep.subr.bf16.mxu0 0
        %679 = vmatpush1.bf16.xpose.msra.mxu0 0
        %680 = vmatprep.subr.bf16.mxu0 0
        %681 = vmatpush1.bf16.xpose.msra.mxu0 0
        %682 = vmatprep.subr.bf16.mxu0 0
        %683 = vmatpush1.bf16.xpose.msra.mxu0 0
        %684 = vmatprep.subr.bf16.mxu0 0
        %685 = vmatpush1.bf16.xpose.msra.mxu0 0
        %686 = vmatprep.mubr.bf16.mxu0 0
        %687 = vmatmul.mubr.bf16.gmra.mrb[0].mxu0 %v649
        %v688 = vpop.f32.mrb[0].mxu0
        %v689 = vadd.f32 0.0, %v688
        %v690 = vpop.f32.mrb[0].mxu0
        %v691 = vpop.f32.mrb[0].mxu0
        %v692 = vpop.f32.mrb[0].mxu0
        %693 = vdwg.mxu0
        %v694 = vsel %vm406, %v689, -inf
        %695 = vmax.xlane.f32.xlu0 %v694
        %v696 = vpop.xlane.xlu0 %695
        %v697 = vsub.f32 %v689, %v696
        %v698 = vmul.f32 %v697, 1.442695
        %v699 = vpow.pop %v698
        %v700 = vsel %vm406, %v699, 0.0
        %701 = vadd.xlane.f32.xlu0 %v700
        %v702 = vpop.xlane.xlu0 %701
        %v703 = vrcp.pop %v702
        %v704 = vmul.f32 %v699, %v703
        %v705 = vpack.c.bf16 %v704, %v704
        %706 = vrot.lane.b32.xlu0 %v643, 48
        %v707 = vpop.permute.xlu0 %706
        %v709 = vsel %vm406, %v705, 0
        %v712 = vsel %vm470, %v707, 0
        %714 = vmatprep.subr.bf16.mxu0 0
        %715 = vmatpush1.bf16.msra.mxu0 %v712
        %716 = vmatprep.subr.bf16.mxu0 0
        %717 = vmatpush1.bf16.msra.mxu0 0
        %718 = vmatprep.subr.bf16.mxu0 0
        %719 = vmatpush1.bf16.msra.mxu0 0
        %720 = vmatprep.subr.bf16.mxu0 0
        %721 = vmatpush1.bf16.msra.mxu0 0
        %722 = vmatprep.subr.bf16.mxu0 0
        %723 = vmatpush1.bf16.msra.mxu0 0
        %724 = vmatprep.subr.bf16.mxu0 0
        %725 = vmatpush1.bf16.msra.mxu0 0
        %726 = vmatprep.subr.bf16.mxu0 0
        %727 = vmatpush1.bf16.msra.mxu0 0
        %728 = vmatprep.subr.bf16.mxu0 0
        %729 = vmatpush1.bf16.msra.mxu0 0
        %730 = vmatprep.subr.bf16.mxu0 0
        %731 = vmatpush1.bf16.msra.mxu0 0
        %732 = vmatprep.subr.bf16.mxu0 0
        %733 = vmatpush1.bf16.msra.mxu0 0
        %734 = vmatprep.subr.bf16.mxu0 0
        %735 = vmatpush1.bf16.msra.mxu0 0
        %736 = vmatprep.subr.bf16.mxu0 0
        %737 = vmatpush1.bf16.msra.mxu0 0
        %738 = vmatprep.subr.bf16.mxu0 0
        %739 = vmatpush1.bf16.msra.mxu0 0
        %740 = vmatprep.subr.bf16.mxu0 0
        %741 = vmatpush1.bf16.msra.mxu0 0
        %742 = vmatprep.subr.bf16.mxu0 0
        %743 = vmatpush1.bf16.msra.mxu0 0
        %744 = vmatprep.subr.bf16.mxu0 0
        %745 = vmatpush1.bf16.msra.mxu0 0
        %746 = vmatprep.mubr.bf16.mxu0 0
        %747 = vmatmul.mubr.bf16.gmra.mrb[0].mxu0 %v709
        %v748 = vpop.f32.mrb[0].mxu0
        %v749 = vadd.f32 0.0, %v748
        %v750 = vpop.f32.mrb[0].mxu0
        %v751 = vpop.f32.mrb[0].mxu0
        %v752 = vpop.f32.mrb[0].mxu0
        %753 = vdwg.mxu0
        %v754 = vpack.c.bf16 %v749, %v749
        %v756 = vunpack.c.l.b16 %v754
        %v757 = vpack.c.b16 %v756, %v756
        %758 = vrot.lane.b32.xlu0 %v757, 16
        %v759 = vpop.permute.xlu0 %758
        %vm761 = vcmask 191616
        %762 = vst.msk [vmem:[#allocation3] sm:$0xf] %vm761, %v759
        %v763 = vld [vmem:[#allocation2] sm:$0xf]
        %v765 = vunpack.c.l.b16 %v763
        %v766 = vpack.c.b16 %v765, %v765
        %767 = vrot.lane.b32.xlu0 %v766, 104
        %v768 = vpop.permute.xlu0 %767
        %769 = vrot.lane.b32.xlu0 %v766, 72
        %v770 = vpop.permute.xlu0 %769
        %v772 = vsel %vm406, %v768, 0
        %v775 = vsel %vm406, %v770, 0
        %777 = vmatprep.subr.bf16.mxu0 0
        %778 = vmatpush1.bf16.xpose.msra.mxu0 %v775
        %779 = vmatprep.subr.bf16.mxu0 0
        %780 = vmatpush1.bf16.xpose.msra.mxu0 0
        %781 = vmatprep.subr.bf16.mxu0 0
        %782 = vmatpush1.bf16.xpose.msra.mxu0 0
        %783 = vmatprep.subr.bf16.mxu0 0
        %784 = vmatpush1.bf16.xpose.msra.mxu0 0
        %785 = vmatprep.subr.bf16.mxu0 0
        %786 = vmatpush1.bf16.xpose.msra.mxu0 0
        %787 = vmatprep.subr.bf16.mxu0 0
        %788 = vmatpush1.bf16.xpose.msra.mxu0 0
        %789 = vmatprep.subr.bf16.mxu0 0
        %790 = vmatpush1.bf16.xpose.msra.mxu0 0
        %791 = vmatprep.subr.bf16.mxu0 0
        %792 = vmatpush1.bf16.xpose.msra.mxu0 0
        %793 = vmatprep.subr.bf16.mxu0 0
        %794 = vmatpush1.bf16.xpose.msra.mxu0 0
        %795 = vmatprep.subr.bf16.mxu0 0
        %796 = vmatpush1.bf16.xpose.msra.mxu0 0
        %797 = vmatprep.subr.bf16.mxu0 0
        %798 = vmatpush1.bf16.xpose.msra.mxu0 0
        %799 = vmatprep.subr.bf16.mxu0 0
        %800 = vmatpush1.bf16.xpose.msra.mxu0 0
        %801 = vmatprep.subr.bf16.mxu0 0
        %802 = vmatpush1.bf16.xpose.msra.mxu0 0
        %803 = vmatprep.subr.bf16.mxu0 0
        %804 = vmatpush1.bf16.xpose.msra.mxu0 0
        %805 = vmatprep.subr.bf16.mxu0 0
        %806 = vmatpush1.bf16.xpose.msra.mxu0 0
        %807 = vmatprep.subr.bf16.mxu0 0
        %808 = vmatpush1.bf16.xpose.msra.mxu0 0
        %809 = vmatprep.mubr.bf16.mxu0 0
        %810 = vmatmul.mubr.bf16.gmra.mrb[0].mxu0 %v772
        %v811 = vpop.f32.mrb[0].mxu0
        %v812 = vadd.f32 0.0, %v811
        %v813 = vpop.f32.mrb[0].mxu0
        %v814 = vpop.f32.mrb[0].mxu0
        %v815 = vpop.f32.mrb[0].mxu0
        %816 = vdwg.mxu0
        %v817 = vsel %vm406, %v812, -inf
        %818 = vmax.xlane.f32.xlu0 %v817
        %v819 = vpop.xlane.xlu0 %818
        %v820 = vsub.f32 %v812, %v819
        %v821 = vmul.f32 %v820, 1.442695
        %v822 = vpow.pop %v821
        %v823 = vsel %vm406, %v822, 0.0
        %824 = vadd.xlane.f32.xlu0 %v823
        %v825 = vpop.xlane.xlu0 %824
        %v826 = vrcp.pop %v825
        %v827 = vmul.f32 %v822, %v826
        %v828 = vpack.c.bf16 %v827, %v827
        %829 = vrot.lane.b32.xlu0 %v766, 40
        %v830 = vpop.permute.xlu0 %829
        %v832 = vsel %vm406, %v828, 0
        %v835 = vsel %vm470, %v830, 0
        %837 = vmatprep.subr.bf16.mxu0 0
        %838 = vmatpush1.bf16.msra.mxu0 %v835
        %839 = vmatprep.subr.bf16.mxu0 0
        %840 = vmatpush1.bf16.msra.mxu0 0
        %841 = vmatprep.subr.bf16.mxu0 0
        %842 = vmatpush1.bf16.msra.mxu0 0
        %843 = vmatprep.subr.bf16.mxu0 0
        %844 = vmatpush1.bf16.msra.mxu0 0
        %845 = vmatprep.subr.bf16.mxu0 0
        %846 = vmatpush1.bf16.msra.mxu0 0
        %847 = vmatprep.subr.bf16.mxu0 0
        %848 = vmatpush1.bf16.msra.mxu0 0
        %849 = vmatprep.subr.bf16.mxu0 0
        %850 = vmatpush1.bf16.msra.mxu0 0
        %851 = vmatprep.subr.bf16.mxu0 0
        %852 = vmatpush1.bf16.msra.mxu0 0
        %853 = vmatprep.subr.bf16.mxu0 0
        %854 = vmatpush1.bf16.msra.mxu0 0
        %855 = vmatprep.subr.bf16.mxu0 0
        %856 = vmatpush1.bf16.msra.mxu0 0
        %857 = vmatprep.subr.bf16.mxu0 0
        %858 = vmatpush1.bf16.msra.mxu0 0
        %859 = vmatprep.subr.bf16.mxu0 0
        %860 = vmatpush1.bf16.msra.mxu0 0
        %861 = vmatprep.subr.bf16.mxu0 0
        %862 = vmatpush1.bf16.msra.mxu0 0
        %863 = vmatprep.subr.bf16.mxu0 0
        %864 = vmatpush1.bf16.msra.mxu0 0
        %865 = vmatprep.subr.bf16.mxu0 0
        %866 = vmatpush1.bf16.msra.mxu0 0
        %867 = vmatprep.subr.bf16.mxu0 0
        %868 = vmatpush1.bf16.msra.mxu0 0
        %869 = vmatprep.mubr.bf16.mxu0 0
        %870 = vmatmul.mubr.bf16.gmra.mrb[0].mxu0 %v832
        %v871 = vpop.f32.mrb[0].mxu0
        %v872 = vadd.f32 0.0, %v871
        %v873 = vpop.f32.mrb[0].mxu0
        %v874 = vpop.f32.mrb[0].mxu0
        %v875 = vpop.f32.mrb[0].mxu0
        %876 = vdwg.mxu0
        %v877 = vpack.c.bf16 %v872, %v872
        %v879 = vunpack.c.l.b16 %v877
        %v880 = vpack.c.b16 %v879, %v879
        %881 = vrot.lane.b32.xlu0 %v880, 24
        %v882 = vpop.permute.xlu0 %881
        %vm884 = vcmask 257216
        %885 = vst.msk [vmem:[#allocation3] sm:$0xf] %vm884, %v882
        %v886 = vld [vmem:[#allocation3] sm:$0xf]
        %v887 = vld [vmem:[%s3] sm:$0xf]
        %v888 = vld [vmem:[%s3 + $0x4] sm:$0xf]
        %v889 = vld [vmem:[%s3 + $0x8] sm:$0xf]
        %v890 = vld [vmem:[%s3 + $0xc] sm:$0xf]
        %v891 = vld [vmem:[%s4] sm:$0x1]
        %v893 = vlaneseq
        %v894 = vshrl.u32 %v893, 7
        %v895 = vsub.s32 0, %v894
        %v896 = vrot.slane %v891, %v895
        %v902 = vunpack.c.l.b16 %v887
        %v903 = vunpack.c.l.b16 %v888
        %v904 = vunpack.c.l.b16 %v889
        %v905 = vunpack.c.l.b16 %v890
        %v906 = vpack.c.b16 %v903, %v902
        %v907 = vpack.c.b16 %v905, %v904
        %v911 = vsel %vm353, %v886, 0
        %913 = vmatprep.subr.bf16.mxu0 0
        %914 = vmatpush1.bf16.msra.mxu0 %v906
        %915 = vmatprep.subr.bf16.mxu0 0
        %916 = vmatpush1.bf16.msra.mxu0 %v907
        %917 = vmatprep.subr.bf16.mxu0 0
        %918 = vmatpush1.bf16.msra.mxu0 0
        %919 = vmatprep.subr.bf16.mxu0 0
        %920 = vmatpush1.bf16.msra.mxu0 0
        %921 = vmatprep.subr.bf16.mxu0 0
        %922 = vmatpush1.bf16.msra.mxu0 0
        %923 = vmatprep.subr.bf16.mxu0 0
        %924 = vmatpush1.bf16.msra.mxu0 0
        %925 = vmatprep.subr.bf16.mxu0 0
        %926 = vmatpush1.bf16.msra.mxu0 0
        %927 = vmatprep.subr.bf16.mxu0 0
        %928 = vmatpush1.bf16.msra.mxu0 0
        %929 = vmatprep.subr.bf16.mxu0 0
        %930 = vmatpush1.bf16.msra.mxu0 0
        %931 = vmatprep.subr.bf16.mxu0 0
        %932 = vmatpush1.bf16.msra.mxu0 0
        %933 = vmatprep.subr.bf16.mxu0 0
        %934 = vmatpush1.bf16.msra.mxu0 0
        %935 = vmatprep.subr.bf16.mxu0 0
        %936 = vmatpush1.bf16.msra.mxu0 0
        %937 = vmatprep.subr.bf16.mxu0 0
        %938 = vmatpush1.bf16.msra.mxu0 0
        %939 = vmatprep.subr.bf16.mxu0 0
        %940 = vmatpush1.bf16.msra.mxu0 0
        %941 = vmatprep.subr.bf16.mxu0 0
        %942 = vmatpush1.bf16.msra.mxu0 0
        %943 = vmatprep.subr.bf16.mxu0 0
        %944 = vmatpush1.bf16.msra.mxu0 0
        %945 = vmatprep.mubr.bf16.mxu0 0
        %946 = vmatmul.mubr.bf16.gmra.mrb[0].mxu0 %v911
        %v947 = vpop.f32.mrb[0].mxu0
        %v948 = vadd.f32 %v896, %v947
        %v949 = vpop.f32.mrb[0].mxu0
        %v950 = vpop.f32.mrb[0].mxu0
        %v951 = vpop.f32.mrb[0].mxu0
        %952 = vdwg.mxu0
        %v953 = vpack.c.bf16 %v948, %v948
        %v954 = vld [vmem:[%s5] sm:$0xf]
        %v955 = vld [vmem:[%s5 + $0x4] sm:$0xf]
        %v956 = vld [vmem:[%s5 + $0x8] sm:$0xf]
        %v957 = vld [vmem:[%s5 + $0xc] sm:$0xf]
        %v958 = vld [vmem:[%s6] sm:$0x1]
        %v960 = vlaneseq
        %v961 = vshrl.u32 %v960, 7
        %v962 = vsub.s32 0, %v961
        %v963 = vrot.slane %v958, %v962
        %v969 = vunpack.c.l.b16 %v954
        %v970 = vunpack.c.l.b16 %v955
        %v971 = vunpack.c.l.b16 %v956
        %v972 = vunpack.c.l.b16 %v957
        %v973 = vpack.c.b16 %v970, %v969
        %v974 = vpack.c.b16 %v972, %v971
        %v978 = vsel %vm353, %v953, 0
        %980 = vmatprep.subr.bf16.mxu0 0
        %981 = vmatpush1.bf16.msra.mxu0 %v973
        %982 = vmatprep.subr.bf16.mxu0 0
        %983 = vmatpush1.bf16.msra.mxu0 %v974
        %984 = vmatprep.subr.bf16.mxu0 0
        %985 = vmatpush1.bf16.msra.mxu0 0
        %986 = vmatprep.subr.bf16.mxu0 0
        %987 = vmatpush1.bf16.msra.mxu0 0
        %988 = vmatprep.subr.bf16.mxu0 0
        %989 = vmatpush1.bf16.msra.mxu0 0
        %990 = vmatprep.subr.bf16.mxu0 0
        %991 = vmatpush1.bf16.msra.mxu0 0
        %992 = vmatprep.subr.bf16.mxu0 0
        %993 = vmatpush1.bf16.msra.mxu0 0
        %994 = vmatprep.subr.bf16.mxu0 0
        %995 = vmatpush1.bf16.msra.mxu0 0
        %996 = vmatprep.subr.bf16.mxu0 0
        %997 = vmatpush1.bf16.msra.mxu0 0
        %998 = vmatprep.subr.bf16.mxu0 0
        %999 = vmatpush1.bf16.msra.mxu0 0
        %1000 = vmatprep.subr.bf16.mxu0 0
        %1001 = vmatpush1.bf16.msra.mxu0 0
        %1002 = vmatprep.subr.bf16.mxu0 0
        %1003 = vmatpush1.bf16.msra.mxu0 0
        %1004 = vmatprep.subr.bf16.mxu0 0
        %1005 = vmatpush1.bf16.msra.mxu0 0
        %1006 = vmatprep.subr.bf16.mxu0 0
        %1007 = vmatpush1.bf16.msra.mxu0 0
        %1008 = vmatprep.subr.bf16.mxu0 0
        %1009 = vmatpush1.bf16.msra.mxu0 0
        %1010 = vmatprep.subr.bf16.mxu0 0
        %1011 = vmatpush1.bf16.msra.mxu0 0
        %1012 = vmatprep.mubr.bf16.mxu0 0
        %1013 = vmatmul.mubr.bf16.gmra.mrb[0].mxu0 %v978
        %v1014 = vpop.f32.mrb[0].mxu0
        %v1015 = vadd.f32 %v963, %v1014
        %v1016 = vpop.f32.mrb[0].mxu0
        %v1017 = vpop.f32.mrb[0].mxu0
        %v1018 = vpop.f32.mrb[0].mxu0
        %1019 = vdwg.mxu0
        %v1020 = vmul.f32 %v1015, 0.5
        %v1021 = vmul.f32 %v1015, 0.70710677
        %v1022 = verf.f32.pop %v1021
        %v1023 = vadd.f32 %v1022, 1.0
        %v1024 = vmul.f32 %v1020, %v1023
        %v1025 = vpack.c.bf16 %v1024, %v1024
        %v1026 = vld [vmem:[%s7] sm:$0xf]
        %v1027 = vld [vmem:[%s7 + $0x4] sm:$0xf]
        %v1028 = vld [vmem:[%s7 + $0x8] sm:$0xf]
        %v1029 = vld [vmem:[%s7 + $0xc] sm:$0xf]
        %v1030 = vld [vmem:[%s7 + $0x10] sm:$0xf]
        %v1031 = vld [vmem:[%s7 + $0x14] sm:$0xf]
        %v1032 = vld [vmem:[%s7 + $0x18] sm:$0xf]
        %v1033 = vld [vmem:[%s7 + $0x1c] sm:$0xf]
        %v1034 = vld [vmem:[%s7 + $0x20] sm:$0xf]
        %v1035 = vld [vmem:[%s7 + $0x24] sm:$0xf]
        %v1036 = vld [vmem:[%s7 + $0x28] sm:$0xf]
        %v1037 = vld [vmem:[%s7 + $0x2c] sm:$0xf]
        %v1038 = vld [vmem:[%s7 + $0x30] sm:$0xf]
        %v1039 = vld [vmem:[%s7 + $0x34] sm:$0xf]
        %v1040 = vld [vmem:[%s7 + $0x38] sm:$0xf]
        %v1041 = vld [vmem:[%s7 + $0x3c] sm:$0xf]
        %v1042 = vld [vmem:[%s8] sm:$0x1]
        %v1044 = vlaneseq
        %v1045 = vshrl.u32 %v1044, 7
        %v1046 = vsub.s32 0, %v1045
        %v1047 = vrot.slane %v1042, %v1046
        %v1065 = vunpack.c.l.b16 %v1026
        %v1066 = vunpack.c.l.b16 %v1027
        %v1067 = vunpack.c.l.b16 %v1028
        %v1068 = vunpack.c.l.b16 %v1029
        %v1069 = vunpack.c.l.b16 %v1030
        %v1070 = vunpack.c.l.b16 %v1031
        %v1071 = vunpack.c.l.b16 %v1032
        %v1072 = vunpack.c.l.b16 %v1033
        %v1073 = vunpack.c.l.b16 %v1034
        %v1074 = vunpack.c.l.b16 %v1035
        %v1075 = vunpack.c.l.b16 %v1036
        %v1076 = vunpack.c.l.b16 %v1037
        %v1077 = vunpack.c.l.b16 %v1038
        %v1078 = vunpack.c.l.b16 %v1039
        %v1079 = vunpack.c.l.b16 %v1040
        %v1080 = vunpack.c.l.b16 %v1041
        %v1081 = vpack.c.b16 %v1066, %v1065
        %v1082 = vpack.c.b16 %v1068, %v1067
        %v1083 = vpack.c.b16 %v1070, %v1069
        %v1084 = vpack.c.b16 %v1072, %v1071
        %v1085 = vpack.c.b16 %v1074, %v1073
        %v1086 = vpack.c.b16 %v1076, %v1075
        %v1087 = vpack.c.b16 %v1078, %v1077
        %v1088 = vpack.c.b16 %v1080, %v1079
        %1097 = vmatprep.subr.bf16.mxu0 0
        %1098 = vmatpush1.bf16.msra.mxu0 %v1081
        %1099 = vmatprep.subr.bf16.mxu0 0
        %1100 = vmatpush1.bf16.msra.mxu0 %v1082
        %1101 = vmatprep.subr.bf16.mxu0 0
        %1102 = vmatpush1.bf16.msra.mxu0 %v1083
        %1103 = vmatprep.subr.bf16.mxu0 0
        %1104 = vmatpush1.bf16.msra.mxu0 %v1084
        %1105 = vmatprep.subr.bf16.mxu0 0
        %1106 = vmatpush1.bf16.msra.mxu0 %v1085
        %1107 = vmatprep.subr.bf16.mxu0 0
        %1108 = vmatpush1.bf16.msra.mxu0 %v1086
        %1109 = vmatprep.subr.bf16.mxu0 0
        %1110 = vmatpush1.bf16.msra.mxu0 %v1087
        %1111 = vmatprep.subr.bf16.mxu0 0
        %1112 = vmatpush1.bf16.msra.mxu0 %v1088
        %1113 = vmatprep.subr.bf16.mxu0 0
        %1114 = vmatpush1.bf16.msra.mxu0 0
        %1115 = vmatprep.subr.bf16.mxu0 0
        %1116 = vmatpush1.bf16.msra.mxu0 0
        %1117 = vmatprep.subr.bf16.mxu0 0
        %1118 = vmatpush1.bf16.msra.mxu0 0
        %1119 = vmatprep.subr.bf16.mxu0 0
        %1120 = vmatpush1.bf16.msra.mxu0 0
        %1121 = vmatprep.subr.bf16.mxu0 0
        %1122 = vmatpush1.bf16.msra.mxu0 0
        %1123 = vmatprep.subr.bf16.mxu0 0
        %1124 = vmatpush1.bf16.msra.mxu0 0
        %1125 = vmatprep.subr.bf16.mxu0 0
        %1126 = vmatpush1.bf16.msra.mxu0 0
        %1127 = vmatprep.subr.bf16.mxu0 0
        %1128 = vmatpush1.bf16.msra.mxu0 0
        %1129 = vmatprep.mubr.bf16.mxu0 0
        %1130 = vmatmul.mubr.bf16.gmra.mrb[0].mxu0 %v1025
        %v1131 = vpop.f32.mrb[0].mxu0
        %v1132 = vadd.f32 %v1047, %v1131
        %v1133 = vpop.f32.mrb[0].mxu0
        %v1134 = vpop.f32.mrb[0].mxu0
        %v1135 = vpop.f32.mrb[0].mxu0
        %1136 = vdwg.mxu0
        %v1137 = vadd.f32 %v1132, %v948
        %1138 = vst.msk [vmem:[%s323] sm:$0xff] %vm353, %v1137
        %s1139 = sand.u32 %s225, 1
        %s1140 = scalar_lea.sflag [#allocation5], %s1139
        %s1141 = sand.u32 %s225, 1
        %s1142 = smul.addr %s1141, 8
        %s1143 = scalar_lea.vmem [#allocation4], %s1142
        // Predicated region
        $region57: #{tpu_custom_call.1} parent=55 // pred_check
          %p1144 = pneg %p235
        $region58: #{tpu_custom_call.1} parent=55 // pred_check_branch
          %1146 = sbr.rel (%p1144) target = $region60
        $region59: #{tpu_custom_call.1} parent=55 // pred_region
          %s1148 = ssub.s32 128, 128
          %1149 = vsyncadd %s1140, %s1148
          %s1150 = smul.addr %s23, 128
          %s1151 = scalar_lea.hbm %s9, %s1150
          %s1153 = sshll.u32 %s1143, 4
          %s1154 = int_to_ptr.vmem [resolvable:$true] %s1153
          %1156 = dma.vmem_to_hbm [thread:$0]  %s1154, 128, %s1151, %s1140
        $region60: #{tpu_custom_call.1} parent=55 // pred_fallthru
          _
      $region56: #{tpu_custom_call.1} parent=5 // pred_fallthru
        _
      %p1157 = scmp.le.s32.totalorder 2, %s18
      // Predicated region
      $region61: #{tpu_custom_call.1} parent=5 // pred_check
        %p1158 = pneg %p1157
      $region62: #{tpu_custom_call.1} parent=5 // pred_check_branch
        %1160 = sbr.rel (%p1158) target = $region64
      $region63: #{tpu_custom_call.1} parent=5 // pred_region
        %s1161 = ssub.s32 %s18, 2
        // Predicated region
        $region65: #{tpu_custom_call.1} parent=63 // pred_check
          %p1162 = pneg %p241
        $region66: #{tpu_custom_call.1} parent=63 // pred_check_branch
          %1164 = sbr.rel (%p1162) target = $region68
        $region67: #{tpu_custom_call.1} parent=63 // pred_region
          %s1165 = sand.u32 %s226, 1
          %s1166 = scalar_lea.sflag [#allocation5], %s1165
          %s1167 = sand.u32 %s226, 1
          %s1168 = smul.addr %s1167, 8
          %s1169 = scalar_lea.vmem [#allocation4], %s1168
          %1170 = dma.done %s1166, 128
        $region68: #{tpu_custom_call.1} parent=63 // pred_fallthru
          _
      $region64: #{tpu_custom_call.1} parent=5 // pred_fallthru
        _
    $region6: #{tpu_custom_call.1} parent=1 // loop_footer
      %s22 = sadd.s32 1, %s18
    $region7: #{tpu_custom_call.1} parent=1 // loop_footer_branch
      %17 = sbr.rel target = $region3
    $region8: #{tpu_custom_call.1} parent=1 // loop_exit
      _
    %1171 = vsyncpa [#allocation5], 1
    %s1172 = scalar_lea.sflag [#allocation5], 1
    %1173 = vsyncpa %s1172, 1

// kernel: tpu_custom_call.1
$region0: #{tpu_custom_call.1}
  #allocation0 [shape = 'u32[]', space=smem, size = 0x4, offset = 0x4, fixed_abs, tag = 'smem constant byte address 0x4 - core index']
  #allocation1 [shape = 'u32[144,128]{1,0:T(1,128)}', space=vmem, size = 0x12000, scoped, tag = 'internal scratch']
  #allocation2 [shape = 'bf16[8,96]{1,0:T(8,128)(2,1)}', space=vmem, size = 0x800, scoped, tag = 'scratch operand']
  #allocation3 [shape = 'bf16[8,32]{1,0:T(8,128)(2,1)}', space=vmem, size = 0x800, scoped, tag = 'scratch operand']
  %s0 = inlined_call_operand.vmem [shape: bf16[2,8,32], index: 0, kind: input, shape index: {}]
  %s1 = inlined_call_operand.vmem [shape: bf16[32,96], index: 1, kind: input, shape index: {}]
  %s2 = inlined_call_operand.vmem [shape: f32[1,96], index: 2, kind: input, shape index: {}]
  %s3 = inlined_call_operand.vmem [shape: bf16[32,32], index: 3, kind: input, shape index: {}]
  %s4 = inlined_call_operand.vmem [shape: f32[1,32], index: 4, kind: input, shape index: {}]
  %s5 = inlined_call_operand.vmem [shape: bf16[32,128], index: 5, kind: input, shape index: {}]
  %s6 = inlined_call_operand.vmem [shape: f32[1,128], index: 6, kind: input, shape index: {}]
  %s7 = inlined_call_operand.vmem [shape: bf16[128,32], index: 7, kind: input, shape index: {}]
  %s8 = inlined_call_operand.vmem [shape: f32[1,32], index: 8, kind: input, shape index: {}]
  %s9 = inlined_call_operand.hbm [shape: f32[2,8,32], index: 9, kind: output, shape index: {}]
  %s10 = sld [smem:[#allocation0]]
  $region69: #{tpu_custom_call.1} parent=0
    _
  %s12 = ssub.s32 1, %s10
  %s13 = scalar_select 0, %s12, %s10
  $region1: #{tpu_custom_call.1} parent=0
    #allocation4 [shape = 'u8[8192]{0}', space=vmem, size = 0x2000, scoped, tag = 'output window, operand 0']
    #allocation5 [shape = 's32[2]{0}', space=sflag, size = 0x8, scoped, tag = 'scoped memory for tpu_custom_call.1']
    %14 = vsyncpa [#allocation5], 0
    %s15 = scalar_lea.sflag [#allocation5], 1
    %16 = vsyncpa %s15, 0
    loop: start=0, step=1, limit=4
    $region2: #{tpu_custom_call.1} parent=1 // loop_pre_header
      _
    $region3: #{tpu_custom_call.1} parent=1 // loop_header
      %s18 = sphi 0, %s22
      %p19 = scmp.ge.s32.totalorder %s18, 4
      %s28 = sphi 0, %s30
      %s31 = sphi 0, %s28
      %s32 = sphi 0, %s31
      %s48 = sphi 0, %s32
      %s52 = sphi 0, %s52
      %s54 = sphi 0, %s52
      %s55 = sphi 0, %s54
      %s69 = sphi 0, %s55
      %s73 = sphi 0, %s73
      %s75 = sphi 0, %s73
      %s76 = sphi 0, %s75
      %s90 = sphi 0, %s76
      %s94 = sphi 0, %s94
      %s96 = sphi 0, %s94
      %s97 = sphi 0, %s96
      %s111 = sphi 0, %s97
      %s115 = sphi 0, %s115
      %s117 = sphi 0, %s115
      %s118 = sphi 0, %s117
      %s132 = sphi 0, %s118
      %s136 = sphi 0, %s136
      %s138 = sphi 0, %s136
      %s139 = sphi 0, %s138
      %s153 = sphi 0, %s139
      %s157 = sphi 0, %s157
      %s159 = sphi 0, %s157
      %s160 = sphi 0, %s159
      %s174 = sphi 0, %s160
      %s178 = sphi 0, %s178
      %s180 = sphi 0, %s178
      %s181 = sphi 0, %s180
      %s195 = sphi 0, %s181
      %s199 = sphi 0, %s199
      %s201 = sphi 0, %s199
      %s202 = sphi 0, %s201
      %s216 = sphi 0, %s202
      %s222 = sphi 0, %s224
      %s225 = sphi 0, %s222
      %s226 = sphi 0, %s225
      %s242 = sphi 0, %s226
    $region4: #{tpu_custom_call.1} parent=1 // loop_header_branch
      %21 = sbr.rel (%p19) target = $region8
    $region5: #{tpu_custom_call.1} parent=1 // loop_body
      %s23 = ssub.s32 %s18, 1
      %s24 = ssub.s32 %s18, 2
      %s25 = sadd.s32 %s18, 1
      %s26 = ssub.s32 %s18, %s25
      %p27 = scmp.eq.s32.totalorder %s26, 0
      %s29 = sadd.s32 %s28, 1
      %s30 = scalar_select %p27, %s28, %s29
      %p33 = pneg %p27
      %p34 = scmp.eq.s32.totalorder %s18, 1
      %p35 = por %p33, %p34
      %p36 = scmp.ne.s32.totalorder %s28, %s31
      %p37 = scmp.eq.s32.totalorder %s18, 0
      %p38 = por %p36, %p37
      %p39 = scmp.ne.s32.totalorder %s28, %s31
      %p40 = scmp.eq.s32.totalorder %s23, 1
      %p41 = por %p39, %p40
      %p42 = scmp.ne.s32.totalorder %s31, %s32
      %p43 = scmp.eq.s32.totalorder %s23, 0
      %p44 = por %p42, %p43
      %p45 = scmp.ne.s32.totalorder %s31, %s32
      %p46 = scmp.eq.s32.totalorder %s24, 1
      %p47 = por %p45, %p46
      %p49 = scmp.ne.s32.totalorder %s32, %s48
      %p50 = scmp.eq.s32.totalorder %s24, 0
      %p51 = por %p49, %p50
      %s53 = sadd.s32 %s52, 1
      %p56 = scmp.eq.s32.totalorder %s18, 1
      %p57 = scmp.ne.s32.totalorder %s52, %s54
      %p58 = scmp.eq.s32.totalorder %s18, 0
      %p59 = por %p57, %p58
      %p60 = scmp.ne.s32.totalorder %s52, %s54
      %p61 = scmp.eq.s32.totalorder %s23, 1
      %p62 = por %p60, %p61
      %p63 = scmp.ne.s32.totalorder %s54, %s55
      %p64 = scmp.eq.s32.totalorder %s23, 0
      %p65 = por %p63, %p64
      %p66 = scmp.ne.s32.totalorder %s54, %s55
      %p67 = scmp.eq.s32.totalorder %s24, 1
      %p68 = por %p66, %p67
      %p70 = scmp.ne.s32.totalorder %s55, %s69
      %p71 = scmp.eq.s32.totalorder %s24, 0
      %p72 = por %p70, %p71
      %s74 = sadd.s32 %s73, 1
      %p77 = scmp.eq.s32.totalorder %s18, 1
      %p78 = scmp.ne.s32.totalorder %s73, %s75
      %p79 = scmp.eq.s32.totalorder %s18, 0
      %p80 = por %p78, %p79
      %p81 = scmp.ne.s32.totalorder %s73, %s75
      %p82 = scmp.eq.s32.totalorder %s23, 1
      %p83 = por %p81, %p82
      %p84 = scmp.ne.s32.totalorder %s75, %s76
      %p85 = scmp.eq.s32.totalorder %s23, 0
      %p86 = por %p84, %p85
      %p87 = scmp.ne.s32.totalorder %s75, %s76
      %p88 = scmp.eq.s32.totalorder %s24, 1
      %p89 = por %p87, %p88
      %p91 = scmp.ne.s32.totalorder %s76, %s90
      %p92 = scmp.eq.s32.totalorder %s24, 0
      %p93 = por %p91, %p92
      %s95 = sadd.s32 %s94, 1
      %p98 = scmp.eq.s32.totalorder %s18, 1
      %p99 = scmp.ne.s32.totalorder %s94, %s96
      %p100 = scmp.eq.s32.totalorder %s18, 0
      %p101 = por %p99, %p100
      %p102 = scmp.ne.s32.totalorder %s94, %s96
      %p103 = scmp.eq.s32.totalorder %s23, 1
      %p104 = por %p102, %p103
      %p105 = scmp.ne.s32.totalorder %s96, %s97
      %p106 = scmp.eq.s32.totalorder %s23, 0
      %p107 = por %p105, %p106
      %p108 = scmp.ne.s32.totalorder %s96, %s97
      %p109 = scmp.eq.s32.totalorder %s24, 1
      %p110 = por %p108, %p109
      %p112 = scmp.ne.s32.totalorder %s97, %s111
      %p113 = scmp.eq.s32.totalorder %s24, 0
      %p114 = por %p112, %p113
      %s116 = sadd.s32 %s115, 1
      %p119 = scmp.eq.s32.totalorder %s18, 1
      %p120 = scmp.ne.s32.totalorder %s115, %s117
      %p121 = scmp.eq.s32.totalorder %s18, 0
      %p122 = por %p120, %p121
      %p123 = scmp.ne.s32.totalorder %s115, %s117
      %p124 = scmp.eq.s32.totalorder %s23, 1
      %p125 = por %p123, %p124
      %p126 = scmp.ne.s32.totalorder %s117, %s118
      %p127 = scmp.eq.s32.totalorder %s23, 0
      %p128 = por %p126, %p127
      %p129 = scmp.ne.s32.totalorder %s117, %s118
      %p130 = scmp.eq.s32.totalorder %s24, 1
      %p131 = por %p129, %p130
      %p133 = scmp.ne.s32.totalorder %s118, %s132
      %p134 = scmp.eq.s32.totalorder %s24, 0
      %p135 = por %p133, %p134
      %s137 = sadd.s32 %s136, 1
      %p140 = scmp.eq.s32.totalorder %s18, 1
      %p141 = scmp.ne.s32.totalorder %s136, %s138
      %p142 = scmp.eq.s32.totalorder %s18, 0
      %p143 = por %p141, %p142
      %p144 = scmp.ne.s32.totalorder %s136, %s138
      %p145 = scmp.eq.s32.totalorder %s23, 1
      %p146 = por %p144, %p145
      %p147 = scmp.ne.s32.totalorder %s138, %s139
      %p148 = scmp.eq.s32.totalorder %s23, 0
      %p149 = por %p147, %p148
      %p150 = scmp.ne.s32.totalorder %s138, %s139
      %p151 = scmp.eq.s32.totalorder %s24, 1
      %p152 = por %p150, %p151
      %p154 = scmp.ne.s32.totalorder %s139, %s153
      %p155 = scmp.eq.s32.totalorder %s24, 0
      %p156 = por %p154, %p155
      %s158 = sadd.s32 %s157, 1
      %p161 = scmp.eq.s32.totalorder %s18, 1
      %p162 = scmp.ne.s32.totalorder %s157, %s159
      %p163 = scmp.eq.s32.totalorder %s18, 0
      %p164 = por %p162, %p163
      %p165 = scmp.ne.s32.totalorder %s157, %s159
      %p166 = scmp.eq.s32.totalorder %s23, 1
      %p167 = por %p165, %p166
      %p168 = scmp.ne.s32.totalorder %s159, %s160
      %p169 = scmp.eq.s32.totalorder %s23, 0
      %p170 = por %p168, %p169
      %p171 = scmp.ne.s32.totalorder %s159, %s160
      %p172 = scmp.eq.s32.totalorder %s24, 1
      %p173 = por %p171, %p172
      %p175 = scmp.ne.s32.totalorder %s160, %s174
      %p176 = scmp.eq.s32.totalorder %s24, 0
      %p177 = por %p175, %p176
      %s179 = sadd.s32 %s178, 1
      %p182 = scmp.eq.s32.totalorder %s18, 1
      %p183 = scmp.ne.s32.totalorder %s178, %s180
      %p184 = scmp.eq.s32.totalorder %s18, 0
      %p185 = por %p183, %p184
      %p186 = scmp.ne.s32.totalorder %s178, %s180
      %p187 = scmp.eq.s32.totalorder %s23, 1
      %p188 = por %p186, %p187
      %p189 = scmp.ne.s32.totalorder %s180, %s181
      %p190 = scmp.eq.s32.totalorder %s23, 0
      %p191 = por %p189, %p190
      %p192 = scmp.ne.s32.totalorder %s180, %s181
      %p193 = scmp.eq.s32.totalorder %s24, 1
      %p194 = por %p192, %p193
      %p196 = scmp.ne.s32.totalorder %s181, %s195
      %p197 = scmp.eq.s32.totalorder %s24, 0
      %p198 = por %p196, %p197
      %s200 = sadd.s32 %s199, 1
      %p203 = scmp.eq.s32.totalorder %s18, 1
      %p204 = scmp.ne.s32.totalorder %s199, %s201
      %p205 = scmp.eq.s32.totalorder %s18, 0
      %p206 = por %p204, %p205
      %p207 = scmp.ne.s32.totalorder %s199, %s201
      %p208 = scmp.eq.s32.totalorder %s23, 1
      %p209 = por %p207, %p208
      %p210 = scmp.ne.s32.totalorder %s201, %s202
      %p211 = scmp.eq.s32.totalorder %s23, 0
      %p212 = por %p210, %p211
      %p213 = scmp.ne.s32.totalorder %s201, %s202
      %p214 = scmp.eq.s32.totalorder %s24, 1
      %p215 = por %p213, %p214
      %p217 = scmp.ne.s32.totalorder %s202, %s216
      %p218 = scmp.eq.s32.totalorder %s24, 0
      %p219 = por %p217, %p218
      %s220 = ssub.s32 %s18, %s25
      %p221 = scmp.eq.s32.totalorder %s220, 0
      %s223 = sadd.s32 %s222, 1
      %s224 = scalar_select %p221, %s222, %s223
      %p227 = pneg %p221
      %p228 = scmp.eq.s32.totalorder %s18, 1
      %p229 = por %p227, %p228
      %p230 = scmp.ne.s32.totalorder %s222, %s225
      %p231 = scmp.eq.s32.totalorder %s18, 0
      %p232 = por %p230, %p231
      %p233 = scmp.ne.s32.totalorder %s222, %s225
      %p234 = scmp.eq.s32.totalorder %s23, 1
      %p235 = por %p233, %p234
      %p236 = scmp.ne.s32.totalorder %s225, %s226
      %p237 = scmp.eq.s32.totalorder %s23, 0
      %p238 = por %p236, %p237
      %p239 = scmp.ne.s32.totalorder %s225, %s226
      %p240 = scmp.eq.s32.totalorder %s24, 1
      %p241 = por %p239, %p240
      %p243 = scmp.ne.s32.totalorder %s226, %s242
      %p244 = scmp.eq.s32.totalorder %s24, 0
      %p245 = por %p243, %p244
      %p246 = scmp.le.s32.totalorder 1, %s18
      %p247 = scmp.lt.s32.totalorder %s18, 3
      %p248 = pnand %p246, %p247
      %p249 = pneg %p248
      // Predicated region
      $region9: #{tpu_custom_call.1} parent=5 // pred_check
        _
      $region10: #{tpu_custom_call.1} parent=5 // pred_check_branch
        %251 = sbr.rel (%p248) target = $region12
      $region11: #{tpu_custom_call.1} parent=5 // pred_region
        %s252 = ssub.s32 %s18, 1
        // Predicated region
        $region13: #{tpu_custom_call.1} parent=11 // pred_check
          %p253 = pneg %p65
        $region14: #{tpu_custom_call.1} parent=11 // pred_check_branch
          %255 = sbr.rel (%p253) target = $region16
        $region15: #{tpu_custom_call.1} parent=11 // pred_region
          _
        $region16: #{tpu_custom_call.1} parent=11 // pred_fallthru
          _
        // Predicated region
        $region17: #{tpu_custom_call.1} parent=11 // pred_check
          %p256 = pneg %p86
        $region18: #{tpu_custom_call.1} parent=11 // pred_check_branch
          %258 = sbr.rel (%p256) target = $region20
        $region19: #{tpu_custom_call.1} parent=11 // pred_region
          _
        $region20: #{tpu_custom_call.1} parent=11 // pred_fallthru
          _
        // Predicated region
        $region21: #{tpu_custom_call.1} parent=11 // pred_check
          %p259 = pneg %p107
        $region22: #{tpu_custom_call.1} parent=11 // pred_check_branch
          %261 = sbr.rel (%p259) target = $region24
        $region23: #{tpu_custom_call.1} parent=11 // pred_region
          _
        $region24: #{tpu_custom_call.1} parent=11 // pred_fallthru
          _
        // Predicated region
        $region25: #{tpu_custom_call.1} parent=11 // pred_check
          %p262 = pneg %p128
        $region26: #{tpu_custom_call.1} parent=11 // pred_check_branch
          %264 = sbr.rel (%p262) target = $region28
        $region27: #{tpu_custom_call.1} parent=11 // pred_region
          _
        $region28: #{tpu_custom_call.1} parent=11 // pred_fallthru
          _
        // Predicated region
        $region29: #{tpu_custom_call.1} parent=11 // pred_check
          %p265 = pneg %p149
        $region30: #{tpu_custom_call.1} parent=11 // pred_check_branch
          %267 = sbr.rel (%p265) target = $region32
        $region31: #{tpu_custom_call.1} parent=11 // pred_region
          _
        $region32: #{tpu_custom_call.1} parent=11 // pred_fallthru
          _
        // Predicated region
        $region33: #{tpu_custom_call.1} parent=11 // pred_check
          %p268 = pneg %p170
        $region34: #{tpu_custom_call.1} parent=11 // pred_check_branch
          %270 = sbr.rel (%p268) target = $region36
        $region35: #{tpu_custom_call.1} parent=11 // pred_region
          _
        $region36: #{tpu_custom_call.1} parent=11 // pred_fallthru
          _
        // Predicated region
        $region37: #{tpu_custom_call.1} parent=11 // pred_check
          %p271 = pneg %p191
        $region38: #{tpu_custom_call.1} parent=11 // pred_check_branch
          %273 = sbr.rel (%p271) target = $region40
        $region39: #{tpu_custom_call.1} parent=11 // pred_region
          _
        $region40: #{tpu_custom_call.1} parent=11 // pred_fallthru
          _
        // Predicated region
        $region41: #{tpu_custom_call.1} parent=11 // pred_check
          %p274 = pneg %p212
        $region42: #{tpu_custom_call.1} parent=11 // pred_check_branch
          %276 = sbr.rel (%p274) target = $region44
        $region43: #{tpu_custom_call.1} parent=11 // pred_region
          _
        $region44: #{tpu_custom_call.1} parent=11 // pred_fallthru
          _
      $region12: #{tpu_custom_call.1} parent=5 // pred_fallthru
        _
      %p277 = scmp.lt.s32.totalorder %s18, 2
      // Predicated region
      $region45: #{tpu_custom_call.1} parent=5 // pred_check
        %p278 = pneg %p277
      $region46: #{tpu_custom_call.1} parent=5 // pred_check_branch
        %280 = sbr.rel (%p278) target = $region48
      $region47: #{tpu_custom_call.1} parent=5 // pred_region
        // Predicated region
        $region49: #{tpu_custom_call.1} parent=47 // pred_check
          %p281 = pneg %p38
        $region50: #{tpu_custom_call.1} parent=47 // pred_check_branch
          %283 = sbr.rel (%p281) target = $region52
        $region51: #{tpu_custom_call.1} parent=47 // pred_region
          %p284 = scmp.lt.s32.totalorder %s18, 1
          %s285 = scalar_select %p284, %s18, 1
          %s286 = smul.addr %s285, 4
          %s287 = scalar_lea.vmem %s0, %s286
        $region52: #{tpu_custom_call.1} parent=47 // pred_fallthru
          _
      $region48: #{tpu_custom_call.1} parent=5 // pred_fallthru
        _
      %p288 = scmp.le.s32.totalorder 1, %s18
      %p289 = scmp.lt.s32.totalorder %s18, 3
      %p290 = pnand %p288, %p289
      %p291 = pneg %p290
      // Predicated region
      $region53: #{tpu_custom_call.1} parent=5 // pred_check
        _
      $region54: #{tpu_custom_call.1} parent=5 // pred_check_branch
        %293 = sbr.rel (%p290) target = $region56
      $region55: #{tpu_custom_call.1} parent=5 // pred_region
        %s294 = ssub.s32 %s18, 1
        %p295 = scmp.lt.s32.totalorder %s23, 1
        %s296 = scalar_select %p295, %s23, 1
        %s297 = smul.addr %s296, 4
        %s298 = scalar_lea.vmem %s0, %s297
        %p299 = pneg %p44
        %p300 = pneg %p41
        %p301 = pneg %p65
        %p302 = pneg %p62
        %p303 = pneg %p86
        %p304 = pneg %p83
        %p305 = pneg %p107
        %p306 = pneg %p104
        %p307 = pneg %p128
        %p308 = pneg %p125
        %p309 = pneg %p149
        %p310 = pneg %p146
        %p311 = pneg %p170
        %p312 = pneg %p167
        %p313 = pneg %p191
        %p314 = pneg %p188
        %p315 = pneg %p212
        %p316 = pneg %p209
        %p317 = pneg %p238
        %p318 = pneg %p235
        %s319 = sand.u32 %s225, 1
        %s320 = scalar_lea.sflag [#allocation5], %s319
        %s321 = sand.u32 %s225, 1
        %s322 = smul.addr %s321, 8
        %s323 = scalar_lea.vmem [#allocation4], %s322
        %p324 = scmp.lt.s32.totalorder %s23, 1
        %s325 = scalar_select %p324, %s23, 1
        %s326 = smul.addr %s325, 4
        %s327 = scalar_lea.vmem %s0, %s326
        %v329 = vld [vmem:[%s327] sm:$0xf]
        %v330 = vld [vmem:[%s1] sm:$0xf]
        %v331 = vld [vmem:[%s1 + $0x4] sm:$0xf]
        %v332 = vld [vmem:[%s1 + $0x8] sm:$0xf]
        %v333 = vld [vmem:[%s1 + $0xc] sm:$0xf]
        %v334 = vld [vmem:[%s2] sm:$0x1]
        %v336 = vlaneseq
        %v337 = vshrl.u32 %v336, 7
        %v338 = vsub.s32 0, %v337
        %v339 = vrot.slane %v334, %v338
        %v345 = vunpack.c.l.b16 %v330
        %v346 = vunpack.c.l.b16 %v331
        %v347 = vunpack.c.l.b16 %v332
        %v348 = vunpack.c.l.b16 %v333
        %v349 = vpack.c.b16 %v346, %v345
        %v350 = vpack.c.b16 %v348, %v347
        %vm353 = vcmask 261120
        %v355 = vsel %vm353, %v329, 0
        %357 = vmatprep.subr.bf16.mxu0 0
        %358 = vmatpush1.bf16.msra.mxu0 %v349
        %359 = vmatprep.subr.bf16.mxu0 0
        %360 = vmatpush1.bf16.msra.mxu0 %v350
        %361 = vmatprep.subr.bf16.mxu0 0
        %362 = vmatpush1.bf16.msra.mxu0 0
        %363 = vmatprep.subr.bf16.mxu0 0
        %364 = vmatpush1.bf16.msra.mxu0 0
        %365 = vmatprep.subr.bf16.mxu0 0
        %366 = vmatpush1.bf16.msra.mxu0 0
        %367 = vmatprep.subr.bf16.mxu0 0
        %368 = vmatpush1.bf16.msra.mxu0 0
        %369 = vmatprep.subr.bf16.mxu0 0
        %370 = vmatpush1.bf16.msra.mxu0 0
        %371 = vmatprep.subr.bf16.mxu0 0
        %372 = vmatpush1.bf16.msra.mxu0 0
        %373 = vmatprep.subr.bf16.mxu0 0
        %374 = vmatpush1.bf16.msra.mxu0 0
        %375 = vmatprep.subr.bf16.mxu0 0
        %376 = vmatpush1.bf16.msra.mxu0 0
        %377 = vmatprep.subr.bf16.mxu0 0
        %378 = vmatpush1.bf16.msra.mxu0 0
        %379 = vmatprep.subr.bf16.mxu0 0
        %380 = vmatpush1.bf16.msra.mxu0 0
        %381 = vmatprep.subr.bf16.mxu0 0
        %382 = vmatpush1.bf16.msra.mxu0 0
        %383 = vmatprep.subr.bf16.mxu0 0
        %384 = vmatpush1.bf16.msra.mxu0 0
        %385 = vmatprep.subr.bf16.mxu0 0
        %386 = vmatpush1.bf16.msra.mxu0 0
        %387 = vmatprep.subr.bf16.mxu0 0
        %388 = vmatpush1.bf16.msra.mxu0 0
        %389 = vmatprep.mubr.bf16.mxu0 0
        %390 = vmatmul.mubr.bf16.gmra.mrb[0].mxu0 %v355
        %v391 = vpop.f32.mrb[0].mxu0
        %v392 = vadd.f32 %v339, %v391
        %v393 = vpop.f32.mrb[0].mxu0
        %v394 = vpop.f32.mrb[0].mxu0
        %v395 = vpop.f32.mrb[0].mxu0
        %396 = vdwg.mxu0
        %v397 = vpack.c.bf16 %v392, %v392
        %vm398 = vcmask 781312
        %399 = vst.msk [vmem:[#allocation2] sm:$0xf] %vm398, %v397
        %v400 = vld [vmem:[#allocation2] sm:$0xf]
        %v402 = vunpack.c.l.b16 %v400
        %v403 = vpack.c.b16 %v402, %v402
        %404 = vrot.lane.b32.xlu0 %v403, 96
        %v405 = vpop.permute.xlu0 %404
        %vm406 = vcmask 64512
        %v408 = vsel %vm406, %v400, 0
        %v411 = vsel %vm406, %v405, 0
        %413 = vmatprep.subr.bf16.mxu0 0
        %414 = vmatpush1.bf16.xpose.msra.mxu0 %v411
        %415 = vmatprep.subr.bf16.mxu0 0
        %416 = vmatpush1.bf16.xpose.msra.mxu0 0
        %417 = vmatprep.subr.bf16.mxu0 0
        %418 = vmatpush1.bf16.xpose.msra.mxu0 0
        %419 = vmatprep.subr.bf16.mxu0 0
        %420 = vmatpush1.bf16.xpose.msra.mxu0 0
        %421 = vmatprep.subr.bf16.mxu0 0
        %422 = vmatpush1.bf16.xpose.msra.mxu0 0
        %423 = vmatprep.subr.bf16.mxu0 0
        %424 = vmatpush1.bf16.xpose.msra.mxu0 0
        %425 = vmatprep.subr.bf16.mxu0 0
        %426 = vmatpush1.bf16.xpose.msra.mxu0 0
        %427 = vmatprep.subr.bf16.mxu0 0
        %428 = vmatpush1.bf16.xpose.msra.mxu0 0
        %429 = vmatprep.subr.bf16.mxu0 0
        %430 = vmatpush1.bf16.xpose.msra.mxu0 0
        %431 = vmatprep.subr.bf16.mxu0 0
        %432 = vmatpush1.bf16.xpose.msra.mxu0 0
        %433 = vmatprep.subr.bf16.mxu0 0
        %434 = vmatpush1.bf16.xpose.msra.mxu0 0
        %435 = vmatprep.subr.bf16.mxu0 0
        %436 = vmatpush1.bf16.xpose.msra.mxu0 0
        %437 = vmatprep.subr.bf16.mxu0 0
        %438 = vmatpush1.bf16.xpose.msra.mxu0 0
        %439 = vmatprep.subr.bf16.mxu0 0
        %440 = vmatpush1.bf16.xpose.msra.mxu0 0
        %441 = vmatprep.subr.bf16.mxu0 0
        %442 = vmatpush1.bf16.xpose.msra.mxu0 0
        %443 = vmatprep.subr.bf16.mxu0 0
        %444 = vmatpush1.bf16.xpose.msra.mxu0 0
        %445 = vmatprep.mubr.bf16.mxu0 0
        %446 = vmatmul.mubr.bf16.gmra.mrb[0].mxu0 %v408
        %v447 = vpop.f32.mrb[0].mxu0
        %v448 = vadd.f32 0.0, %v447
        %v449 = vpop.f32.mrb[0].mxu0
        %v450 = vpop.f32.mrb[0].mxu0
        %v451 = vpop.f32.mrb[0].mxu0
        %452 = vdwg.mxu0
        %v453 = vsel %vm406, %v448, -inf
        %454 = vmax.xlane.f32.xlu0 %v453
        %v455 = vpop.xlane.xlu0 %454
        %v456 = vsub.f32 %v448, %v455
        %v457 = vmul.f32 %v456, 1.442695
        %v458 = vpow.pop %v457
        %v459 = vsel %vm406, %v458, 0.0
        %460 = vadd.xlane.f32.xlu0 %v459
        %v461 = vpop.xlane.xlu0 %460
        %v462 = vrcp.pop %v461
        %v463 = vmul.f32 %v458, %v462
        %v464 = vpack.c.bf16 %v463, %v463
        %465 = vrot.lane.b32.xlu0 %v403, 64
        %v466 = vpop.permute.xlu0 %465
        %v468 = vsel %vm406, %v464, 0
        %vm470 = vcmask 1043456
        %v472 = vsel %vm470, %v466, 0
        %474 = vmatprep.subr.bf16.mxu0 0
        %475 = vmatpush1.bf16.msra.mxu0 %v472
        %476 = vmatprep.subr.bf16.mxu0 0
        %477 = vmatpush1.bf16.msra.mxu0 0
        %478 = vmatprep.subr.bf16.mxu0 0
        %479 = vmatpush1.bf16.msra.mxu0 0
        %480 = vmatprep.subr.bf16.mxu0 0
        %481 = vmatpush1.bf16.msra.mxu0 0
        %482 = vmatprep.subr.bf16.mxu0 0
        %483 = vmatpush1.bf16.msra.mxu0 0
        %484 = vmatprep.subr.bf16.mxu0 0
        %485 = vmatpush1.bf16.msra.mxu0 0
        %486 = vmatprep.subr.bf16.mxu0 0
        %487 = vmatpush1.bf16.msra.mxu0 0
        %488 = vmatprep.subr.bf16.mxu0 0
        %489 = vmatpush1.bf16.msra.mxu0 0
        %490 = vmatprep.subr.bf16.mxu0 0
        %491 = vmatpush1.bf16.msra.mxu0 0
        %492 = vmatprep.subr.bf16.mxu0 0
        %493 = vmatpush1.bf16.msra.mxu0 0
        %494 = vmatprep.subr.bf16.mxu0 0
        %495 = vmatpush1.bf16.msra.mxu0 0
        %496 = vmatprep.subr.bf16.mxu0 0
        %497 = vmatpush1.bf16.msra.mxu0 0
        %498 = vmatprep.subr.bf16.mxu0 0
        %499 = vmatpush1.bf16.msra.mxu0 0
        %500 = vmatprep.subr.bf16.mxu0 0
        %501 = vmatpush1.bf16.msra.mxu0 0
        %502 = vmatprep.subr.bf16.mxu0 0
        %503 = vmatpush1.bf16.msra.mxu0 0
        %504 = vmatprep.subr.bf16.mxu0 0
        %505 = vmatpush1.bf16.msra.mxu0 0
        %506 = vmatprep.mubr.bf16.mxu0 0
        %507 = vmatmul.mubr.bf16.gmra.mrb[0].mxu0 %v468
        %v508 = vpop.f32.mrb[0].mxu0
        %v509 = vadd.f32 0.0, %v508
        %v510 = vpop.f32.mrb[0].mxu0
        %v511 = vpop.f32.mrb[0].mxu0
        %v512 = vpop.f32.mrb[0].mxu0
        %513 = vdwg.mxu0
        %v514 = vpack.c.bf16 %v509, %v509
        %vm515 = vcmask 60416
        %516 = vst.msk [vmem:[#allocation3] sm:$0xf] %vm515, %v514
        %v517 = vld [vmem:[#allocation2] sm:$0xf]
        %v519 = vunpack.c.l.b16 %v517
        %v520 = vpack.c.b16 %v519, %v519
        %521 = vrot.lane.b32.xlu0 %v520, 120
        %v522 = vpop.permute.xlu0 %521
        %523 = vrot.lane.b32.xlu0 %v520, 88
        %v524 = vpop.permute.xlu0 %523
        %v526 = vsel %vm406, %v522, 0
        %v529 = vsel %vm406, %v524, 0
        %531 = vmatprep.subr.bf16.mxu0 0
        %532 = vmatpush1.bf16.xpose.msra.mxu0 %v529
        %533 = vmatprep.subr.bf16.mxu0 0
        %534 = vmatpush1.bf16.xpose.msra.mxu0 0
        %535 = vmatprep.subr.bf16.mxu0 0
        %536 = vmatpush1.bf16.xpose.msra.mxu0 0
        %537 = vmatprep.subr.bf16.mxu0 0
        %538 = vmatpush1.bf16.xpose.msra.mxu0 0
        %539 = vmatprep.subr.bf16.mxu0 0
        %540 = vmatpush1.bf16.xpose.msra.mxu0 0
        %541 = vmatprep.subr.bf16.mxu0 0
        %542 = vmatpush1.bf16.xpose.msra.mxu0 0
        %543 = vmatprep.subr.bf16.mxu0 0
        %544 = vmatpush1.bf16.xpose.msra.mxu0 0
        %545 = vmatprep.subr.bf16.mxu0 0
        %546 = vmatpush1.bf16.xpose.msra.mxu0 0
        %547 = vmatprep.subr.bf16.mxu0 0
        %548 = vmatpush1.bf16.xpose.msra.mxu0 0
        %549 = vmatprep.subr.bf16.mxu0 0
        %550 = vmatpush1.bf16.xpose.msra.mxu0 0
        %551 = vmatprep.subr.bf16.mxu0 0
        %552 = vmatpush1.bf16.xpose.msra.mxu0 0
        %553 = vmatprep.subr.bf16.mxu0 0
        %554 = vmatpush1.bf16.xpose.msra.mxu0 0
        %555 = vmatprep.subr.bf16.mxu0 0
        %556 = vmatpush1.bf16.xpose.msra.mxu0 0
        %557 = vmatprep.subr.bf16.mxu0 0
        %558 = vmatpush1.bf16.xpose.msra.mxu0 0
        %559 = vmatprep.subr.bf16.mxu0 0
        %560 = vmatpush1.bf16.xpose.msra.mxu0 0
        %561 = vmatprep.subr.bf16.mxu0 0
        %562 = vmatpush1.bf16.xpose.msra.mxu0 0
        %563 = vmatprep.mubr.bf16.mxu0 0
        %564 = vmatmul.mubr.bf16.gmra.mrb[0].mxu0 %v526
        %v565 = vpop.f32.mrb[0].mxu0
        %v566 = vadd.f32 0.0, %v565
        %v567 = vpop.f32.mrb[0].mxu0
        %v568 = vpop.f32.mrb[0].mxu0
        %v569 = vpop.f32.mrb[0].mxu0
        %570 = vdwg.mxu0
        %v571 = vsel %vm406, %v566, -inf
        %572 = vmax.xlane.f32.xlu0 %v571
        %v573 = vpop.xlane.xlu0 %572
        %v574 = vsub.f32 %v566, %v573
        %v575 = vmul.f32 %v574, 1.442695
        %v576 = vpow.pop %v575
        %v577 = vsel %vm406, %v576, 0.0
        %578 = vadd.xlane.f32.xlu0 %v577
        %v579 = vpop.xlane.xlu0 %578
        %v580 = vrcp.pop %v579
        %v581 = vmul.f32 %v576, %v580
        %v582 = vpack.c.bf16 %v581, %v581
        %583 = vrot.lane.b32.xlu0 %v520, 56
        %v584 = vpop.permute.xlu0 %583
        %v586 = vsel %vm406, %v582, 0
        %v589 = vsel %vm470, %v584, 0
        %591 = vmatprep.subr.bf16.mxu0 0
        %592 = vmatpush1.bf16.msra.mxu0 %v589
        %593 = vmatprep.subr.bf16.mxu0 0
        %594 = vmatpush1.bf16.msra.mxu0 0
        %595 = vmatprep.subr.bf16.mxu0 0
        %596 = vmatpush1.bf16.msra.mxu0 0
        %597 = vmatprep.subr.bf16.mxu0 0
        %598 = vmatpush1.bf16.msra.mxu0 0
        %599 = vmatprep.subr.bf16.mxu0 0
        %600 = vmatpush1.bf16.msra.mxu0 0
        %601 = vmatprep.subr.bf16.mxu0 0
        %602 = vmatpush1.bf16.msra.mxu0 0
        %603 = vmatprep.subr.bf16.mxu0 0
        %604 = vmatpush1.bf16.msra.mxu0 0
        %605 = vmatprep.subr.bf16.mxu0 0
        %606 = vmatpush1.bf16.msra.mxu0 0
        %607 = vmatprep.subr.bf16.mxu0 0
        %608 = vmatpush1.bf16.msra.mxu0 0
        %609 = vmatprep.subr.bf16.mxu0 0
        %610 = vmatpush1.bf16.msra.mxu0 0
        %611 = vmatprep.subr.bf16.mxu0 0
        %612 = vmatpush1.bf16.msra.mxu0 0
        %613 = vmatprep.subr.bf16.mxu0 0
        %614 = vmatpush1.bf16.msra.mxu0 0
        %615 = vmatprep.subr.bf16.mxu0 0
        %616 = vmatpush1.bf16.msra.mxu0 0
        %617 = vmatprep.subr.bf16.mxu0 0
        %618 = vmatpush1.bf16.msra.mxu0 0
        %619 = vmatprep.subr.bf16.mxu0 0
        %620 = vmatpush1.bf16.msra.mxu0 0
        %621 = vmatprep.subr.bf16.mxu0 0
        %622 = vmatpush1.bf16.msra.mxu0 0
        %623 = vmatprep.mubr.bf16.mxu0 0
        %624 = vmatmul.mubr.bf16.gmra.mrb[0].mxu0 %v586
        %v625 = vpop.f32.mrb[0].mxu0
        %v626 = vadd.f32 0.0, %v625
        %v627 = vpop.f32.mrb[0].mxu0
        %v628 = vpop.f32.mrb[0].mxu0
        %v629 = vpop.f32.mrb[0].mxu0
        %630 = vdwg.mxu0
        %v631 = vpack.c.bf16 %v626, %v626
        %v633 = vunpack.c.l.b16 %v631
        %v634 = vpack.c.b16 %v633, %v633
        %635 = vrot.lane.b32.xlu0 %v634, 8
        %v636 = vpop.permute.xlu0 %635
        %vm638 = vcmask 126016
        %639 = vst.msk [vmem:[#allocation3] sm:$0xf] %vm638, %v636
        %v640 = vld [vmem:[#allocation2] sm:$0xf]
        %v642 = vunpack.c.l.b16 %v640
        %v643 = vpack.c.b16 %v642, %v642
        %644 = vrot.lane.b32.xlu0 %v643, 112
        %v645 = vpop.permute.xlu0 %644
        %646 = vrot.lane.b32.xlu0 %v643, 80
        %v647 = vpop.permute.xlu0 %646
        %v649 = vsel %vm406, %v645, 0
        %v652 = vsel %vm406, %v647, 0
        %654 = vmatprep.subr.bf16.mxu0 0
        %655 = vmatpush1.bf16.xpose.msra.mxu0 %v652
        %656 = vmatprep.subr.bf16.mxu0 0
        %657 = vmatpush1.bf16.xpose.msra.mxu0 0
        %658 = vmatprep.subr.bf16.mxu0 0
        %659 = vmatpush1.bf16.xpose.msra.mxu0 0
        %660 = vmatprep.subr.bf16.mxu0 0
        %661 = vmatpush1.bf16.xpose.msra.mxu0 0
        %662 = vmatprep.subr.bf16.mxu0 0
        %663 = vmatpush1.bf16.xpose.msra.mxu0 0
        %664 = vmatprep.subr.bf16.mxu0 0
        %665 = vmatpush1.bf16.xpose.msra.mxu0 0
        %666 = vmatprep.subr.bf16.mxu0 0
        %667 = vmatpush1.bf16.xpose.msra.mxu0 0
        %668 = vmatprep.subr.bf16.mxu0 0
        %669 = vmatpush1.bf16.xpose.msra.mxu0 0
        %670 = vmatprep.subr.bf16.mxu0 0
        %671 = vmatpush1.bf16.xpose.msra.mxu0 0
        %672 = vmatprep.subr.bf16.mxu0 0
        %673 = vmatpush1.bf16.xpose.msra.mxu0 0
        %674 = vmatprep.subr.bf16.mxu0 0
        %675 = vmatpush1.bf16.xpose.msra.mxu0 0
        %676 = vmatprep.subr.bf16.mxu0 0
        %677 = vmatpush1.bf16.xpose.msra.mxu0 0
        %678 = vmatprep.subr.bf16.mxu0 0
        %679 = vmatpush1.bf16.xpose.msra.mxu0 0
        %680 = vmatprep.subr.bf16.mxu0 0
        %681 = vmatpush1.bf16.xpose.msra.mxu0 0
        %682 = vmatprep.subr.bf16.mxu0 0
        %683 = vmatpush1.bf16.xpose.msra.mxu0 0
        %684 = vmatprep.subr.bf16.mxu0 0
        %685 = vmatpush1.bf16.xpose.msra.mxu0 0
        %686 = vmatprep.mubr.bf16.mxu0 0
        %687 = vmatmul.mubr.bf16.gmra.mrb[0].mxu0 %v649
        %v688 = vpop.f32.mrb[0].mxu0
        %v689 = vadd.f32 0.0, %v688
        %v690 = vpop.f32.mrb[0].mxu0
        %v691 = vpop.f32.mrb[0].mxu0
        %v692 = vpop.f32.mrb[0].mxu0
        %693 = vdwg.mxu0
        %v694 = vsel %vm406, %v689, -inf
        %695 = vmax.xlane.f32.xlu0 %v694
        %v696 = vpop.xlane.xlu0 %695
        %v697 = vsub.f32 %v689, %v696
        %v698 = vmul.f32 %v697, 1.442695
        %v699 = vpow.pop %v698
        %v700 = vsel %vm406, %v699, 0.0
        %701 = vadd.xlane.f32.xlu0 %v700
        %v702 = vpop.xlane.xlu0 %701
        %v703 = vrcp.pop %v702
        %v704 = vmul.f32 %v699, %v703
        %v705 = vpack.c.bf16 %v704, %v704
        %706 = vrot.lane.b32.xlu0 %v643, 48
        %v707 = vpop.permute.xlu0 %706
        %v709 = vsel %vm406, %v705, 0
        %v712 = vsel %vm470, %v707, 0
        %714 = vmatprep.subr.bf16.mxu0 0
        %715 = vmatpush1.bf16.msra.mxu0 %v712
        %716 = vmatprep.subr.bf16.mxu0 0
        %717 = vmatpush1.bf16.msra.mxu0 0
        %718 = vmatprep.subr.bf16.mxu0 0
        %719 = vmatpush1.bf16.msra.mxu0 0
        %720 = vmatprep.subr.bf16.mxu0 0
        %721 = vmatpush1.bf16.msra.mxu0 0
        %722 = vmatprep.subr.bf16.mxu0 0
        %723 = vmatpush1.bf16.msra.mxu0 0
        %724 = vmatprep.subr.bf16.mxu0 0
        %725 = vmatpush1.bf16.msra.mxu0 0
        %726 = vmatprep.subr.bf16.mxu0 0
        %727 = vmatpush1.bf16.msra.mxu0 0
        %728 = vmatprep.subr.bf16.mxu0 0
        %729 = vmatpush1.bf16.msra.mxu0 0
        %730 = vmatprep.subr.bf16.mxu0 0
        %731 = vmatpush1.bf16.msra.mxu0 0
        %732 = vmatprep.subr.bf16.mxu0 0
        %733 = vmatpush1.bf16.msra.mxu0 0
        %734 = vmatprep.subr.bf16.mxu0 0
        %735 = vmatpush1.bf16.msra.mxu0 0
        %736 = vmatprep.subr.bf16.mxu0 0
        %737 = vmatpush1.bf16.msra.mxu0 0
        %738 = vmatprep.subr.bf16.mxu0 0
        %739 = vmatpush1.bf16.msra.mxu0 0
        %740 = vmatprep.subr.bf16.mxu0 0
        %741 = vmatpush1.bf16.msra.mxu0 0
        %742 = vmatprep.subr.bf16.mxu0 0
        %743 = vmatpush1.bf16.msra.mxu0 0
        %744 = vmatprep.subr.bf16.mxu0 0
        %745 = vmatpush1.bf16.msra.mxu0 0
        %746 = vmatprep.mubr.bf16.mxu0 0
        %747 = vmatmul.mubr.bf16.gmra.mrb[0].mxu0 %v709
        %v748 = vpop.f32.mrb[0].mxu0
        %v749 = vadd.f32 0.0, %v748
        %v750 = vpop.f32.mrb[0].mxu0
        %v751 = vpop.f32.mrb[0].mxu0
        %v752 = vpop.f32.mrb[0].mxu0
        %753 = vdwg.mxu0
        %v754 = vpack.c.bf16 %v749, %v749
        %v756 = vunpack.c.l.b16 %v754
        %v757 = vpack.c.b16 %v756, %v756
        %758 = vrot.lane.b32.xlu0 %v757, 16
        %v759 = vpop.permute.xlu0 %758
        %vm761 = vcmask 191616
        %762 = vst.msk [vmem:[#allocation3] sm:$0xf] %vm761, %v759
        %v763 = vld [vmem:[#allocation2] sm:$0xf]
        %v765 = vunpack.c.l.b16 %v763
        %v766 = vpack.c.b16 %v765, %v765
        %767 = vrot.lane.b32.xlu0 %v766, 104
        %v768 = vpop.permute.xlu0 %767
        %769 = vrot.lane.b32.xlu0 %v766, 72
        %v770 = vpop.permute.xlu0 %769
        %v772 = vsel %vm406, %v768, 0
        %v775 = vsel %vm406, %v770, 0
        %777 = vmatprep.subr.bf16.mxu0 0
        %778 = vmatpush1.bf16.xpose.msra.mxu0 %v775
        %779 = vmatprep.subr.bf16.mxu0 0
        %780 = vmatpush1.bf16.xpose.msra.mxu0 0
        %781 = vmatprep.subr.bf16.mxu0 0
        %782 = vmatpush1.bf16.xpose.msra.mxu0 0
        %783 = vmatprep.subr.bf16.mxu0 0
        %784 = vmatpush1.bf16.xpose.msra.mxu0 0
        %785 = vmatprep.subr.bf16.mxu0 0
        %786 = vmatpush1.bf16.xpose.msra.mxu0 0
        %787 = vmatprep.subr.bf16.mxu0 0
        %788 = vmatpush1.bf16.xpose.msra.mxu0 0
        %789 = vmatprep.subr.bf16.mxu0 0
        %790 = vmatpush1.bf16.xpose.msra.mxu0 0
        %791 = vmatprep.subr.bf16.mxu0 0
        %792 = vmatpush1.bf16.xpose.msra.mxu0 0
        %793 = vmatprep.subr.bf16.mxu0 0
        %794 = vmatpush1.bf16.xpose.msra.mxu0 0
        %795 = vmatprep.subr.bf16.mxu0 0
        %796 = vmatpush1.bf16.xpose.msra.mxu0 0
        %797 = vmatprep.subr.bf16.mxu0 0
        %798 = vmatpush1.bf16.xpose.msra.mxu0 0
        %799 = vmatprep.subr.bf16.mxu0 0
        %800 = vmatpush1.bf16.xpose.msra.mxu0 0
        %801 = vmatprep.subr.bf16.mxu0 0
        %802 = vmatpush1.bf16.xpose.msra.mxu0 0
        %803 = vmatprep.subr.bf16.mxu0 0
        %804 = vmatpush1.bf16.xpose.msra.mxu0 0
        %805 = vmatprep.subr.bf16.mxu0 0
        %806 = vmatpush1.bf16.xpose.msra.mxu0 0
        %807 = vmatprep.subr.bf16.mxu0 0
        %808 = vmatpush1.bf16.xpose.msra.mxu0 0
        %809 = vmatprep.mubr.bf16.mxu0 0
        %810 = vmatmul.mubr.bf16.gmra.mrb[0].mxu0 %v772
        %v811 = vpop.f32.mrb[0].mxu0
        %v812 = vadd.f32 0.0, %v811
        %v813 = vpop.f32.mrb[0].mxu0
        %v814 = vpop.f32.mrb[0].mxu0
        %v815 = vpop.f32.mrb[0].mxu0
        %816 = vdwg.mxu0
        %v817 = vsel %vm406, %v812, -inf
        %818 = vmax.xlane.f32.xlu0 %v817
        %v819 = vpop.xlane.xlu0 %818
        %v820 = vsub.f32 %v812, %v819
        %v821 = vmul.f32 %v820, 1.442695
        %v822 = vpow.pop %v821
        %v823 = vsel %vm406, %v822, 0.0
        %824 = vadd.xlane.f32.xlu0 %v823
        %v825 = vpop.xlane.xlu0 %824
        %v826 = vrcp.pop %v825
        %v827 = vmul.f32 %v822, %v826
        %v828 = vpack.c.bf16 %v827, %v827
        %829 = vrot.lane.b32.xlu0 %v766, 40
        %v830 = vpop.permute.xlu0 %829
        %v832 = vsel %vm406, %v828, 0
        %v835 = vsel %vm470, %v830, 0
        %837 = vmatprep.subr.bf16.mxu0 0
        %838 = vmatpush1.bf16.msra.mxu0 %v835
        %839 = vmatprep.subr.bf16.mxu0 0
        %840 = vmatpush1.bf16.msra.mxu0 0
        %841 = vmatprep.subr.bf16.mxu0 0
        %842 = vmatpush1.bf16.msra.mxu0 0
        %843 = vmatprep.subr.bf16.mxu0 0
        %844 = vmatpush1.bf16.msra.mxu0 0
        %845 = vmatprep.subr.bf16.mxu0 0
        %846 = vmatpush1.bf16.msra.mxu0 0
        %847 = vmatprep.subr.bf16.mxu0 0
        %848 = vmatpush1.bf16.msra.mxu0 0
        %849 = vmatprep.subr.bf16.mxu0 0
        %850 = vmatpush1.bf16.msra.mxu0 0
        %851 = vmatprep.subr.bf16.mxu0 0
        %852 = vmatpush1.bf16.msra.mxu0 0
        %853 = vmatprep.subr.bf16.mxu0 0
        %854 = vmatpush1.bf16.msra.mxu0 0
        %855 = vmatprep.subr.bf16.mxu0 0
        %856 = vmatpush1.bf16.msra.mxu0 0
        %857 = vmatprep.subr.bf16.mxu0 0
        %858 = vmatpush1.bf16.msra.mxu0 0
        %859 = vmatprep.subr.bf16.mxu0 0
        %860 = vmatpush1.bf16.msra.mxu0 0
        %861 = vmatprep.subr.bf16.mxu0 0
        %862 = vmatpush1.bf16.msra.mxu0 0
        %863 = vmatprep.subr.bf16.mxu0 0
        %864 = vmatpush1.bf16.msra.mxu0 0
        %865 = vmatprep.subr.bf16.mxu0 0
        %866 = vmatpush1.bf16.msra.mxu0 0
        %867 = vmatprep.subr.bf16.mxu0 0
        %868 = vmatpush1.bf16.msra.mxu0 0
        %869 = vmatprep.mubr.bf16.mxu0 0
        %870 = vmatmul.mubr.bf16.gmra.mrb[0].mxu0 %v832
        %v871 = vpop.f32.mrb[0].mxu0
        %v872 = vadd.f32 0.0, %v871
        %v873 = vpop.f32.mrb[0].mxu0
        %v874 = vpop.f32.mrb[0].mxu0
        %v875 = vpop.f32.mrb[0].mxu0
        %876 = vdwg.mxu0
        %v877 = vpack.c.bf16 %v872, %v872
        %v879 = vunpack.c.l.b16 %v877
        %v880 = vpack.c.b16 %v879, %v879
        %881 = vrot.lane.b32.xlu0 %v880, 24
        %v882 = vpop.permute.xlu0 %881
        %vm884 = vcmask 257216
        %885 = vst.msk [vmem:[#allocation3] sm:$0xf] %vm884, %v882
        %v886 = vld [vmem:[#allocation3] sm:$0xf]
        %v887 = vld [vmem:[%s3] sm:$0xf]
        %v888 = vld [vmem:[%s3 + $0x4] sm:$0xf]
        %v889 = vld [vmem:[%s3 + $0x8] sm:$0xf]
        %v890 = vld [vmem:[%s3 + $0xc] sm:$0xf]
        %v891 = vld [vmem:[%s4] sm:$0x1]
        %v893 = vlaneseq
        %v894 = vshrl.u32 %v893, 7
        %v895 = vsub.s32 0, %v894
        %v896 = vrot.slane %v891, %v895
        %v902 = vunpack.c.l.b16 %v887
        %v903 = vunpack.c.l.b16 %v888
        %v904 = vunpack.c.l.b16 %v889
        %v905 = vunpack.c.l.b16 %v890
        %v906 = vpack.c.b16 %v903, %v902
        %v907 = vpack.c.b16 %v905, %v904
        %v911 = vsel %vm353, %v886, 0
        %913 = vmatprep.subr.bf16.mxu0 0
        %914 = vmatpush1.bf16.msra.mxu0 %v906
        %915 = vmatprep.subr.bf16.mxu0 0
        %916 = vmatpush1.bf16.msra.mxu0 %v907
        %917 = vmatprep.subr.bf16.mxu0 0
        %918 = vmatpush1.bf16.msra.mxu0 0
        %919 = vmatprep.subr.bf16.mxu0 0
        %920 = vmatpush1.bf16.msra.mxu0 0
        %921 = vmatprep.subr.bf16.mxu0 0
        %922 = vmatpush1.bf16.msra.mxu0 0
        %923 = vmatprep.subr.bf16.mxu0 0
        %924 = vmatpush1.bf16.msra.mxu0 0
        %925 = vmatprep.subr.bf16.mxu0 0
        %926 = vmatpush1.bf16.msra.mxu0 0
        %927 = vmatprep.subr.bf16.mxu0 0
        %928 = vmatpush1.bf16.msra.mxu0 0
        %929 = vmatprep.subr.bf16.mxu0 0
        %930 = vmatpush1.bf16.msra.mxu0 0
        %931 = vmatprep.subr.bf16.mxu0 0
        %932 = vmatpush1.bf16.msra.mxu0 0
        %933 = vmatprep.subr.bf16.mxu0 0
        %934 = vmatpush1.bf16.msra.mxu0 0
        %935 = vmatprep.subr.bf16.mxu0 0
        %936 = vmatpush1.bf16.msra.mxu0 0
        %937 = vmatprep.subr.bf16.mxu0 0
        %938 = vmatpush1.bf16.msra.mxu0 0
        %939 = vmatprep.subr.bf16.mxu0 0
        %940 = vmatpush1.bf16.msra.mxu0 0
        %941 = vmatprep.subr.bf16.mxu0 0
        %942 = vmatpush1.bf16.msra.mxu0 0
        %943 = vmatprep.subr.bf16.mxu0 0
        %944 = vmatpush1.bf16.msra.mxu0 0
        %945 = vmatprep.mubr.bf16.mxu0 0
        %946 = vmatmul.mubr.bf16.gmra.mrb[0].mxu0 %v911
        %v947 = vpop.f32.mrb[0].mxu0
        %v948 = vadd.f32 %v896, %v947
        %v949 = vpop.f32.mrb[0].mxu0
        %v950 = vpop.f32.mrb[0].mxu0
        %v951 = vpop.f32.mrb[0].mxu0
        %952 = vdwg.mxu0
        %v953 = vpack.c.bf16 %v948, %v948
        %v954 = vld [vmem:[%s5] sm:$0xf]
        %v955 = vld [vmem:[%s5 + $0x4] sm:$0xf]
        %v956 = vld [vmem:[%s5 + $0x8] sm:$0xf]
        %v957 = vld [vmem:[%s5 + $0xc] sm:$0xf]
        %v958 = vld [vmem:[%s6] sm:$0x1]
        %v960 = vlaneseq
        %v961 = vshrl.u32 %v960, 7
        %v962 = vsub.s32 0, %v961
        %v963 = vrot.slane %v958, %v962
        %v969 = vunpack.c.l.b16 %v954
        %v970 = vunpack.c.l.b16 %v955
        %v971 = vunpack.c.l.b16 %v956
        %v972 = vunpack.c.l.b16 %v957
        %v973 = vpack.c.b16 %v970, %v969
        %v974 = vpack.c.b16 %v972, %v971
        %v978 = vsel %vm353, %v953, 0
        %980 = vmatprep.subr.bf16.mxu0 0
        %981 = vmatpush1.bf16.msra.mxu0 %v973
        %982 = vmatprep.subr.bf16.mxu0 0
        %983 = vmatpush1.bf16.msra.mxu0 %v974
        %984 = vmatprep.subr.bf16.mxu0 0
        %985 = vmatpush1.bf16.msra.mxu0 0
        %986 = vmatprep.subr.bf16.mxu0 0
        %987 = vmatpush1.bf16.msra.mxu0 0
        %988 = vmatprep.subr.bf16.mxu0 0
        %989 = vmatpush1.bf16.msra.mxu0 0
        %990 = vmatprep.subr.bf16.mxu0 0
        %991 = vmatpush1.bf16.msra.mxu0 0
        %992 = vmatprep.subr.bf16.mxu0 0
        %993 = vmatpush1.bf16.msra.mxu0 0
        %994 = vmatprep.subr.bf16.mxu0 0
        %995 = vmatpush1.bf16.msra.mxu0 0
        %996 = vmatprep.subr.bf16.mxu0 0
        %997 = vmatpush1.bf16.msra.mxu0 0
        %998 = vmatprep.subr.bf16.mxu0 0
        %999 = vmatpush1.bf16.msra.mxu0 0
        %1000 = vmatprep.subr.bf16.mxu0 0
        %1001 = vmatpush1.bf16.msra.mxu0 0
        %1002 = vmatprep.subr.bf16.mxu0 0
        %1003 = vmatpush1.bf16.msra.mxu0 0
        %1004 = vmatprep.subr.bf16.mxu0 0
        %1005 = vmatpush1.bf16.msra.mxu0 0
        %1006 = vmatprep.subr.bf16.mxu0 0
        %1007 = vmatpush1.bf16.msra.mxu0 0
        %1008 = vmatprep.subr.bf16.mxu0 0
        %1009 = vmatpush1.bf16.msra.mxu0 0
        %1010 = vmatprep.subr.bf16.mxu0 0
        %1011 = vmatpush1.bf16.msra.mxu0 0
        %1012 = vmatprep.mubr.bf16.mxu0 0
        %1013 = vmatmul.mubr.bf16.gmra.mrb[0].mxu0 %v978
        %v1014 = vpop.f32.mrb[0].mxu0
        %v1015 = vadd.f32 %v963, %v1014
        %v1016 = vpop.f32.mrb[0].mxu0
        %v1017 = vpop.f32.mrb[0].mxu0
        %v1018 = vpop.f32.mrb[0].mxu0
        %1019 = vdwg.mxu0
        %v1020 = vmul.f32 %v1015, 0.5
        %v1021 = vmul.f32 %v1015, 0.70710677
        %v1022 = verf.f32.pop %v1021
        %v1023 = vadd.f32 %v1022, 1.0
        %v1024 = vmul.f32 %v1020, %v1023
        %v1025 = vpack.c.bf16 %v1024, %v1024
        %v1026 = vld [vmem:[%s7] sm:$0xf]
        %v1027 = vld [vmem:[%s7 + $0x4] sm:$0xf]
        %v1028 = vld [vmem:[%s7 + $0x8] sm:$0xf]
        %v1029 = vld [vmem:[%s7 + $0xc] sm:$0xf]
        %v1030 = vld [vmem:[%s7 + $0x10] sm:$0xf]
        %v1031 = vld [vmem:[%s7 + $0x14] sm:$0xf]
        %v1032 = vld [vmem:[%s7 + $0x18] sm:$0xf]
        %v1033 = vld [vmem:[%s7 + $0x1c] sm:$0xf]
        %v1034 = vld [vmem:[%s7 + $0x20] sm:$0xf]
        %v1035 = vld [vmem:[%s7 + $0x24] sm:$0xf]
        %v1036 = vld [vmem:[%s7 + $0x28] sm:$0xf]
        %v1037 = vld [vmem:[%s7 + $0x2c] sm:$0xf]
        %v1038 = vld [vmem:[%s7 + $0x30] sm:$0xf]
        %v1039 = vld [vmem:[%s7 + $0x34] sm:$0xf]
        %v1040 = vld [vmem:[%s7 + $0x38] sm:$0xf]
        %v1041 = vld [vmem:[%s7 + $0x3c] sm:$0xf]
        %v1042 = vld [vmem:[%s8] sm:$0x1]
        %v1044 = vlaneseq
        %v1045 = vshrl.u32 %v1044, 7
        %v1046 = vsub.s32 0, %v1045
        %v1047 = vrot.slane %v1042, %v1046
        %v1065 = vunpack.c.l.b16 %v1026
        %v1066 = vunpack.c.l.b16 %v1027
        %v1067 = vunpack.c.l.b16 %v1028
        %v1068 = vunpack.c.l.b16 %v1029
        %v1069 = vunpack.c.l.b16 %v1030
        %v1070 = vunpack.c.l.b16 %v1031
        %v1071 = vunpack.c.l.b16 %v1032
        %v1072 = vunpack.c.l.b16 %v1033
        %v1073 = vunpack.c.l.b16 %v1034
        %v1074 = vunpack.c.l.b16 %v1035
        %v1075 = vunpack.c.l.b16 %v1036
        %v1076 = vunpack.c.l.b16 %v1037
        %v1077 = vunpack.c.l.b16 %v1038
        %v1078 = vunpack.c.l.b16 %v1039
        %v1079 = vunpack.c.l.b16 %v1040
        %v1080 = vunpack.c.l.b16 %v1041
        %v1081 = vpack.c.b16 %v1066, %v1065
        %v1082 = vpack.c.b16 %v1068, %v1067
        %v1083 = vpack.c.b16 %v1070, %v1069
        %v1084 = vpack.c.b16 %v1072, %v1071
        %v1085 = vpack.c.b16 %v1074, %v1073
        %v1086 = vpack.c.b16 %v1076, %v1075
        %v1087 = vpack.c.b16 %v1078, %v1077
        %v1088 = vpack.c.b16 %v1080, %v1079
        %1097 = vmatprep.subr.bf16.mxu0 0
        %1098 = vmatpush1.bf16.msra.mxu0 %v1081
        %1099 = vmatprep.subr.bf16.mxu0 0
        %1100 = vmatpush1.bf16.msra.mxu0 %v1082
        %1101 = vmatprep.subr.bf16.mxu0 0
        %1102 = vmatpush1.bf16.msra.mxu0 %v1083
        %1103 = vmatprep.subr.bf16.mxu0 0
        %1104 = vmatpush1.bf16.msra.mxu0 %v1084
        %1105 = vmatprep.subr.bf16.mxu0 0
        %1106 = vmatpush1.bf16.msra.mxu0 %v1085
        %1107 = vmatprep.subr.bf16.mxu0 0
        %1108 = vmatpush1.bf16.msra.mxu0 %v1086
        %1109 = vmatprep.subr.bf16.mxu0 0
        %1110 = vmatpush1.bf16.msra.mxu0 %v1087
        %1111 = vmatprep.subr.bf16.mxu0 0
        %1112 = vmatpush1.bf16.msra.mxu0 %v1088
        %1113 = vmatprep.subr.bf16.mxu0 0
        %1114 = vmatpush1.bf16.msra.mxu0 0
        %1115 = vmatprep.subr.bf16.mxu0 0
        %1116 = vmatpush1.bf16.msra.mxu0 0
        %1117 = vmatprep.subr.bf16.mxu0 0
        %1118 = vmatpush1.bf16.msra.mxu0 0
        %1119 = vmatprep.subr.bf16.mxu0 0
        %1120 = vmatpush1.bf16.msra.mxu0 0
        %1121 = vmatprep.subr.bf16.mxu0 0
        %1122 = vmatpush1.bf16.msra.mxu0 0
        %1123 = vmatprep.subr.bf16.mxu0 0
        %1124 = vmatpush1.bf16.msra.mxu0 0
        %1125 = vmatprep.subr.bf16.mxu0 0
        %1126 = vmatpush1.bf16.msra.mxu0 0
        %1127 = vmatprep.subr.bf16.mxu0 0
        %1128 = vmatpush1.bf16.msra.mxu0 0
        %1129 = vmatprep.mubr.bf16.mxu0 0
        %1130 = vmatmul.mubr.bf16.gmra.mrb[0].mxu0 %v1025
        %v1131 = vpop.f32.mrb[0].mxu0
        %v1132 = vadd.f32 %v1047, %v1131
        %v1133 = vpop.f32.mrb[0].mxu0
        %v1134 = vpop.f32.mrb[0].mxu0
        %v1135 = vpop.f32.mrb[0].mxu0
        %1136 = vdwg.mxu0
        %v1137 = vadd.f32 %v1132, %v948
        %1138 = vst.msk [vmem:[%s323] sm:$0xff] %vm353, %v1137
        %s1139 = sand.u32 %s225, 1
        %s1140 = scalar_lea.sflag [#allocation5], %s1139
        %s1141 = sand.u32 %s225, 1
        %s1142 = smul.addr %s1141, 8
        %s1143 = scalar_lea.vmem [#allocation4], %s1142
        // Predicated region
        $region57: #{tpu_custom_call.1} parent=55 // pred_check
          %p1144 = pneg %p235
        $region58: #{tpu_custom_call.1} parent=55 // pred_check_branch
          %1146 = sbr.rel (%p1144) target = $region60
        $region59: #{tpu_custom_call.1} parent=55 // pred_region
          %s1148 = ssub.s32 128, 128
          %1149 = vsyncadd %s1140, %s1148
          %s1150 = smul.addr %s23, 128
          %s1151 = scalar_lea.hbm %s9, %s1150
          %s1153 = sshll.u32 %s1143, 4
          %s1154 = int_to_ptr.vmem [resolvable:$true] %s1153
          %1156 = dma.vmem_to_hbm [thread:$0]  %s1154, 128, %s1151, %s1140
        $region60: #{tpu_custom_call.1} parent=55 // pred_fallthru
          _
      $region56: #{tpu_custom_call.1} parent=5 // pred_fallthru
        _
      %p1157 = scmp.le.s32.totalorder 2, %s18
      // Predicated region
      $region61: #{tpu_custom_call.1} parent=5 // pred_check
        %p1158 = pneg %p1157
      $region62: #{tpu_custom_call.1} parent=5 // pred_check_branch
        %1160 = sbr.rel (%p1158) target = $region64
      $region63: #{tpu_custom_call.1} parent=5 // pred_region
        %s1161 = ssub.s32 %s18, 2
        // Predicated region
        $region65: #{tpu_custom_call.1} parent=63 // pred_check
          %p1162 = pneg %p241
        $region66: #{tpu_custom_call.1} parent=63 // pred_check_branch
          %1164 = sbr.rel (%p1162) target = $region68
        $region67: #{tpu_custom_call.1} parent=63 // pred_region
          %s1165 = sand.u32 %s226, 1
          %s1166 = scalar_lea.sflag [#allocation5], %s1165
          %s1167 = sand.u32 %s226, 1
          %s1168 = smul.addr %s1167, 8
          %s1169 = scalar_lea.vmem [#allocation4], %s1168
          %1170 = dma.done %s1166, 128
        $region68: #{tpu_custom_call.1} parent=63 // pred_fallthru
          _
      $region64: #{tpu_custom_call.1} parent=5 // pred_fallthru
        _
    $region6: #{tpu_custom_call.1} parent=1 // loop_footer
      %s22 = sadd.s32 1, %s18
    $region7: #{tpu_custom_call.1} parent=1 // loop_footer_branch
      %17 = sbr.rel target = $region3
    $region8: #{tpu_custom_call.1} parent=1 // loop_exit
      _
    %1171 = vsyncpa [#allocation5], 1
    %s1172 = scalar_lea.sflag [#allocation5], 1
    %1173 = vsyncpa %s1172, 1

</llo_original>
